<compile_context>
chip_gen: v7x
topology: tpu7x:2x2x1
jax: 0.10.0
libtpu: 0.0.40
codegen_flags: <defaults>
</compile_context>

<pallas_src>
import math

import jax
import jax.numpy as jnp
from jax.experimental import pallas as pl
from jax.experimental.pallas import tpu as pltpu


def _round_up(x, m):
    return ((x + m - 1) // m) * m


def _choose_bblk(bc, h, w, wfp):
    # Cap the (Bblk*H, Wfp) f32 intermediates at ~2 MiB and the input block at
    # ~1 MiB (safe for the 32 MiB scoped-VMEM default on every generation,
    # including v7x), then make Bblk*H a multiple of 8 sublanes.
    cap_inter = (2 * 1024 * 1024) // max(1, h * wfp * 4)
    cap_input = (1 * 1024 * 1024) // max(1, h * w * 4)
    b = max(1, min(bc, cap_inter, cap_input))
    while (b * h) % 8 != 0:
        b += 1
    return b


def _fft_l1_kernel(p_ref, t_ref, ch_ref, sh_ref, cw_ref, sw_ref, out_ref):
    # p_ref/t_ref: (Bblk, H, W)   ch/sh: (H, H)   cw/sw: (W, Wfp)
    # out_ref: (1, 8, Wfp) lane-dense accumulator, resident across inner axis.
    @pl.when(pl.program_id(1) == 0)
    def _():
        out_ref[...] = jnp.zeros_like(out_ref)

    bblk, h, w = p_ref.shape
    wfp = cw_ref.shape[1]

    # FFT linearity: run rfft2 once on the difference.
    d = p_ref[...].astype(jnp.float32) - t_ref[...].astype(jnp.float32)
    d2 = d.reshape(bblk * h, w)

    # rfft along W (row-wise, shared across all images):  X1 = rw - i*iw
    rw = jnp.dot(d2, cw_ref[...], preferred_element_type=jnp.float32)  # (B*H, Wfp)
    iw = jnp.dot(d2, sw_ref[...], preferred_element_type=jnp.float32)  # (B*H, Wfp)
    rw3 = rw.reshape(bblk, h, wfp)
    iw3 = iw.reshape(bblk, h, wfp)

    # Full FFT along H, per image (batched MXU matmuls, f32 accumulation).
    ch_b = jnp.broadcast_to(ch_ref[...], (bblk, h, h))
    sh_b = jnp.broadcast_to(sh_ref[...], (bblk, h, h))
    re = (jnp.einsum('bmh,bhk->bmk', ch_b, rw3,
                     preferred_element_type=jnp.float32)
          - jnp.einsum('bmh,bhk->bmk', sh_b, iw3,
                       preferred_element_type=jnp.float32))
    im = (jnp.einsum('bmh,bhk->bmk', ch_b, iw3,
                     preferred_element_type=jnp.float32)
          + jnp.einsum('bmh,bhk->bmk', sh_b, rw3,
                       preferred_element_type=jnp.float32))
    # (true imag is -im; |.| is unaffected)

    diff_abs = jnp.abs(re) + jnp.abs(im)                       # (Bblk, H, Wfp)
    # Lane-preserving partial reduction to an (8, Wfp) tile (plain vreg adds).
    partial = jnp.sum(diff_abs.reshape(-1, 8, wfp), axis=0)    # (8, Wfp)
    out_ref[...] += partial[None]


def fft_loss(pred, target, loss_weight=1.0):
    """loss_weight * L1(mean) over stacked real/imag of rfft2(pred/target)."""
    n, c, h, w = pred.shape
    bc = n * c
    wf = w // 2 + 1
    wfp = _round_up(wf, 128)

    p = pred.reshape(bc, h, w)
    t = target.reshape(bc, h, w)

    bblk = _choose_bblk(bc, h, w, wfp)
    bc_pad = _round_up(bc, bblk)
    if bc_pad != bc:
        # Padded images have pred == target == 0 -> zero contribution (exact).
        pad = ((0, bc_pad - bc), (0, 0), (0, 0))
        p = jnp.pad(p, pad)
        t = jnp.pad(t, pad)
    n_steps = bc_pad // bblk
    n_outer = 2 if (n_steps >= 2 and n_steps % 2 == 0) else 1
    n_inner = n_steps // n_outer

    # Exact-angle real DFT bases: reduce (i*j) mod N in integers first.
    hh = jnp.arange(h, dtype=jnp.int32)
    ph = ((hh[:, None] * hh[None, :]) % h).astype(jnp.float32) * (2.0 * math.pi / h)
    ch, sh = jnp.cos(ph), jnp.sin(ph)                                     # (H, H)

    nn = jnp.arange(w, dtype=jnp.int32)
    kk = jnp.arange(wf, dtype=jnp.int32)
    pw = ((nn[:, None] * kk[None, :]) % w).astype(jnp.float32) * (2.0 * math.pi / w)
    cw = jnp.pad(jnp.cos(pw), ((0, 0), (0, wfp - wf)))                    # (W, Wfp)
    sw = jnp.pad(jnp.sin(pw), ((0, 0), (0, wfp - wf)))                    # (W, Wfp)

    partials = pl.pallas_call(
        _fft_l1_kernel,
        out_shape=jax.ShapeDtypeStruct((n_outer, 8, wfp), jnp.float32),
        grid=(n_outer, n_inner),
        in_specs=[
            pl.BlockSpec((bblk, h, w), lambda o, i: (o * n_inner + i, 0, 0)),
            pl.BlockSpec((bblk, h, w), lambda o, i: (o * n_inner + i, 0, 0)),
            pl.BlockSpec((h, h), lambda o, i: (0, 0)),
            pl.BlockSpec((h, h), lambda o, i: (0, 0)),
            pl.BlockSpec((w, wfp), lambda o, i: (0, 0)),
            pl.BlockSpec((w, wfp), lambda o, i: (0, 0)),
        ],
        out_specs=pl.BlockSpec((1, 8, wfp), lambda o, i: (o, 0, 0)),
        compiler_params=pltpu.CompilerParams(
            dimension_semantics=("parallel", "arbitrary")),
    )(p, t, ch, sh, cw, sw)

    # torch L1Loss(reduction='mean') over the stacked [..., H, Wf, 2] tensor.
    n_elems = bc * h * wf * 2
    return loss_weight * jnp.sum(partials) / n_elems


def _ref_fft_loss(pred, target, loss_weight=1.0):
    pf = jnp.fft.rfft2(pred)
    tf = jnp.fft.rfft2(target)
    pr = jnp.stack([pf.real, pf.imag], axis=-1)
    tr = jnp.stack([tf.real, tf.imag], axis=-1)
    return loss_weight * jnp.mean(jnp.abs(pr - tr))


if __name__ == "__main__":
    key = jax.random.PRNGKey(0)
    k1, k2 = jax.random.split(key)
    N, C, H, W = 2, 4, 16, 16
    pred = jax.random.normal(k1, (N, C, H, W), dtype=jnp.float32)
    target = jax.random.normal(k2, (N, C, H, W), dtype=jnp.float32)

    loss = jax.block_until_ready(fft_loss(pred, target, loss_weight=1.0))
    ref = jax.block_until_ready(_ref_fft_loss(pred, target, loss_weight=1.0))

    if not jnp.allclose(loss, ref, rtol=1e-3, atol=1e-3):
        raise AssertionError(f"mismatch: pallas={loss} ref={ref}")
    print("KERNEL_OK")
</pallas_src>

<mosaic_0001>
module attributes {stable_mosaic.version = 11 : i64} {
  func.func @_fft_l1_kernel(%arg0: i32, %arg1: i32, %arg2: memref<8x16x16xf32, #tpu.memory_space<vmem>>, %arg3: memref<8x16x16xf32, #tpu.memory_space<vmem>>, %arg4: memref<16x16xf32, #tpu.memory_space<vmem>>, %arg5: memref<16x16xf32, #tpu.memory_space<vmem>>, %arg6: memref<16x128xf32, #tpu.memory_space<vmem>>, %arg7: memref<16x128xf32, #tpu.memory_space<vmem>>, %arg8: memref<1x8x128xf32, #tpu.memory_space<vmem>>) attributes {dimension_semantics = [#tpu.dimension_semantics<parallel>, #tpu.dimension_semantics<arbitrary>], iteration_bounds = array<i64: 1, 1>, scalar_prefetch = 0 : i64, scratch_operands = 0 : i64, tpu.core_type = #tpu.core_type<tc>, window_params = [{transform_indices = @transform_0, window_bounds = array<i64: 8, 16, 16>}, {transform_indices = @transform_1, window_bounds = array<i64: 8, 16, 16>}, {pipeline_mode = #tpu.pipeline_mode<synchronous>, transform_indices = @transform_2, window_bounds = array<i64: 16, 16>}, {pipeline_mode = #tpu.pipeline_mode<synchronous>, transform_indices = @transform_3, window_bounds = array<i64: 16, 16>}, {pipeline_mode = #tpu.pipeline_mode<synchronous>, transform_indices = @transform_4, window_bounds = array<i64: 16, 128>}, {pipeline_mode = #tpu.pipeline_mode<synchronous>, transform_indices = @transform_5, window_bounds = array<i64: 16, 128>}, {transform_indices = @transform_6, window_bounds = array<i64: 1, 8, 128>}]} {
    %c0_i32 = arith.constant 0 : i32
    %0 = arith.cmpi eq, %arg1, %c0_i32 : i32
    %1 = arith.extui %0 : i1 to i32
    %c0_i32_0 = arith.constant 0 : i32
    %2 = arith.cmpi ne, %1, %c0_i32_0 : i32
    scf.if %2 {
      %cst_26 = arith.constant 0.000000e+00 : f32
      %34 = vector.broadcast %cst_26 : f32 to vector<1x8x128xf32>
      %c0_27 = arith.constant 0 : index
      %c0_28 = arith.constant 0 : index
      %c0_29 = arith.constant 0 : index
      %35 = vector.load %arg8[%c0_27, %c0_28, %c0_29] : memref<1x8x128xf32, #tpu.memory_space<vmem>>, vector<1x8x128xf32>
      tpu.vector_store %arg8[%c0_27, %c0_28, %c0_29], %34 {strides = array<i32>} : memref<1x8x128xf32, #tpu.memory_space<vmem>>, vector<1x8x128xf32>,
    } else {
    }
    %c0 = arith.constant 0 : index
    %c0_1 = arith.constant 0 : index
    %c0_2 = arith.constant 0 : index
    %3 = vector.load %arg2[%c0, %c0_1, %c0_2] : memref<8x16x16xf32, #tpu.memory_space<vmem>>, vector<8x16x16xf32>
    %c0_3 = arith.constant 0 : index
    %c0_4 = arith.constant 0 : index
    %c0_5 = arith.constant 0 : index
    %4 = vector.load %arg3[%c0_3, %c0_4, %c0_5] : memref<8x16x16xf32, #tpu.memory_space<vmem>>, vector<8x16x16xf32>
    %5 = arith.subf %3, %4 : vector<8x16x16xf32>
    %6 = vector.shape_cast %5 : vector<8x16x16xf32> to vector<128x16xf32>
    %c0_6 = arith.constant 0 : index
    %c0_7 = arith.constant 0 : index
    %7 = vector.load %arg6[%c0_6, %c0_7] : memref<16x128xf32, #tpu.memory_space<vmem>>, vector<16x128xf32>
    %cst = arith.constant dense<0.000000e+00> : vector<128x128xf32>
    %8 = tpu.matmul %6, %7, %cst {dimension_numbers = #tpu.dot_dimension_numbers<[1], [0], [0], [1], [0, 0, 1, 1], [], []>} : vector<128x16xf32>, vector<16x128xf32>, vector<128x128xf32> -> vector<128x128xf32>
    %c0_8 = arith.constant 0 : index
    %c0_9 = arith.constant 0 : index
    %9 = vector.load %arg7[%c0_8, %c0_9] : memref<16x128xf32, #tpu.memory_space<vmem>>, vector<16x128xf32>
    %cst_10 = arith.constant dense<0.000000e+00> : vector<128x128xf32>
    %10 = tpu.matmul %6, %9, %cst_10 {dimension_numbers = #tpu.dot_dimension_numbers<[1], [0], [0], [1], [0, 0, 1, 1], [], []>} : vector<128x16xf32>, vector<16x128xf32>, vector<128x128xf32> -> vector<128x128xf32>
    %11 = vector.shape_cast %8 : vector<128x128xf32> to vector<8x16x128xf32>
    %12 = vector.shape_cast %10 : vector<128x128xf32> to vector<8x16x128xf32>
    %c0_11 = arith.constant 0 : index
    %c0_12 = arith.constant 0 : index
    %13 = vector.load %arg4[%c0_11, %c0_12] : memref<16x16xf32, #tpu.memory_space<vmem>>, vector<16x16xf32>
    %14 = vector.shape_cast %13 : vector<16x16xf32> to vector<1x16x16xf32>
    %15 = vector.broadcast %14 : vector<1x16x16xf32> to vector<8x16x16xf32>
    %c0_13 = arith.constant 0 : index
    %c0_14 = arith.constant 0 : index
    %16 = vector.load %arg5[%c0_13, %c0_14] : memref<16x16xf32, #tpu.memory_space<vmem>>, vector<16x16xf32>
    %17 = vector.shape_cast %16 : vector<16x16xf32> to vector<1x16x16xf32>
    %18 = vector.broadcast %17 : vector<1x16x16xf32> to vector<8x16x16xf32>
    "tpu.trace_start"() <{level = 10 : i32, message = "bmh,bhk->bmk"}> : () -> ()
    %cst_15 = arith.constant dense<0.000000e+00> : vector<8x16x128xf32>
    %19 = tpu.matmul %15, %11, %cst_15 {dimension_numbers = #tpu.dot_dimension_numbers<[2], [1], [1], [2], [0, 0, 0, 1, 1, 2], [0], [0]>} : vector<8x16x16xf32>, vector<8x16x128xf32>, vector<8x16x128xf32> -> vector<8x16x128xf32>
    %cst_16 = arith.constant dense<0.000000e+00> : vector<8x16x128xf32>
    %20 = tpu.matmul %18, %12, %cst_16 {dimension_numbers = #tpu.dot_dimension_numbers<[2], [1], [1], [2], [0, 0, 0, 1, 1, 2], [0], [0]>} : vector<8x16x16xf32>, vector<8x16x128xf32>, vector<8x16x128xf32> -> vector<8x16x128xf32>
    "tpu.trace_stop"() : () -> ()
    %21 = arith.subf %19, %20 : vector<8x16x128xf32>
    "tpu.trace_start"() <{level = 10 : i32, message = "bmh,bhk->bmk"}> : () -> ()
    %cst_17 = arith.constant dense<0.000000e+00> : vector<8x16x128xf32>
    %22 = tpu.matmul %15, %12, %cst_17 {dimension_numbers = #tpu.dot_dimension_numbers<[2], [1], [1], [2], [0, 0, 0, 1, 1, 2], [0], [0]>} : vector<8x16x16xf32>, vector<8x16x128xf32>, vector<8x16x128xf32> -> vector<8x16x128xf32>
    %cst_18 = arith.constant dense<0.000000e+00> : vector<8x16x128xf32>
    %23 = tpu.matmul %18, %11, %cst_18 {dimension_numbers = #tpu.dot_dimension_numbers<[2], [1], [1], [2], [0, 0, 0, 1, 1, 2], [0], [0]>} : vector<8x16x16xf32>, vector<8x16x128xf32>, vector<8x16x128xf32> -> vector<8x16x128xf32>
    "tpu.trace_stop"() : () -> ()
    %24 = arith.addf %22, %23 : vector<8x16x128xf32>
    %25 = math.absf %21 : vector<8x16x128xf32>
    %26 = math.absf %24 : vector<8x16x128xf32>
    %27 = arith.addf %25, %26 : vector<8x16x128xf32>
    %28 = vector.shape_cast %27 : vector<8x16x128xf32> to vector<16x8x128xf32>
    %cst_19 = arith.constant dense<0.000000e+00> : vector<8x128xf32>
    %29 = vector.multi_reduction <add>, %28, %cst_19 [0] : vector<16x8x128xf32> to vector<8x128xf32>
    %c0_20 = arith.constant 0 : index
    %c0_21 = arith.constant 0 : index
    %c0_22 = arith.constant 0 : index
    %30 = vector.load %arg8[%c0_20, %c0_21, %c0_22] : memref<1x8x128xf32, #tpu.memory_space<vmem>>, vector<1x8x128xf32>
    %31 = vector.shape_cast %29 : vector<8x128xf32> to vector<1x8x128xf32>
    %32 = arith.addf %30, %31 : vector<1x8x128xf32>
    %c0_23 = arith.constant 0 : index
    %c0_24 = arith.constant 0 : index
    %c0_25 = arith.constant 0 : index
    %33 = vector.load %arg8[%c0_23, %c0_24, %c0_25] : memref<1x8x128xf32, #tpu.memory_space<vmem>>, vector<1x8x128xf32>
    tpu.vector_store %arg8[%c0_23, %c0_24, %c0_25], %32 {strides = array<i32>} : memref<1x8x128xf32, #tpu.memory_space<vmem>>, vector<1x8x128xf32>,
    return
  }
  func.func @transform_0(%arg0: i32, %arg1: i32) -> (i32, i32, i32) {
    %c1_i32 = arith.constant 1 : i32
    %0 = arith.muli %arg0, %c1_i32 : i32
    %1 = arith.addi %0, %arg1 : i32
    %c0_i32 = arith.constant 0 : i32
    %c0_i32_0 = arith.constant 0 : i32
    %c0_i32_1 = arith.constant 0 : i32
    return %1, %c0_i32, %c0_i32_0 : i32, i32, i32
  }
  func.func @transform_1(%arg0: i32, %arg1: i32) -> (i32, i32, i32) {
    %c1_i32 = arith.constant 1 : i32
    %0 = arith.muli %arg0, %c1_i32 : i32
    %1 = arith.addi %0, %arg1 : i32
    %c0_i32 = arith.constant 0 : i32
    %c0_i32_0 = arith.constant 0 : i32
    %c0_i32_1 = arith.constant 0 : i32
    return %1, %c0_i32, %c0_i32_0 : i32, i32, i32
  }
  func.func @transform_2(%arg0: i32, %arg1: i32) -> (i32, i32) {
    %c0_i32 = arith.constant 0 : i32
    %c0_i32_0 = arith.constant 0 : i32
    %c0_i32_1 = arith.constant 0 : i32
    return %c0_i32, %c0_i32_0 : i32, i32
  }
  func.func @transform_3(%arg0: i32, %arg1: i32) -> (i32, i32) {
    %c0_i32 = arith.constant 0 : i32
    %c0_i32_0 = arith.constant 0 : i32
    %c0_i32_1 = arith.constant 0 : i32
    return %c0_i32, %c0_i32_0 : i32, i32
  }
  func.func @transform_4(%arg0: i32, %arg1: i32) -> (i32, i32) {
    %c0_i32 = arith.constant 0 : i32
    %c0_i32_0 = arith.constant 0 : i32
    %c0_i32_1 = arith.constant 0 : i32
    return %c0_i32, %c0_i32_0 : i32, i32
  }
  func.func @transform_5(%arg0: i32, %arg1: i32) -> (i32, i32) {
    %c0_i32 = arith.constant 0 : i32
    %c0_i32_0 = arith.constant 0 : i32
    %c0_i32_1 = arith.constant 0 : i32
    return %c0_i32, %c0_i32_0 : i32, i32
  }
  func.func @transform_6(%arg0: i32, %arg1: i32) -> (i32, i32, i32) {
    %c0_i32 = arith.constant 0 : i32
    %c0_i32_0 = arith.constant 0 : i32
    %c0_i32_1 = arith.constant 0 : i32
    return %arg0, %c0_i32, %c0_i32_0 : i32, i32, i32
  }
}

</mosaic_0001>

<llo_original>
// kernel: tpu_custom_call.1
$region0: #{tpu_custom_call.1}
  #allocation0 [shape = 'u32[]', space=smem, size = 0x4, offset = 0x4, fixed_abs, tag = 'smem constant byte address 0x4 - core index']
  #allocation1 [shape = 'u32[144,128]{1,0:T(1,128)}', space=vmem, size = 0x12000, scoped, tag = 'internal scratch']
  %s0 = inlined_call_operand.hbm [shape: f32[8,16,16], index: 0, kind: input, shape index: {}]
  %s1 = inlined_call_operand.hbm [shape: f32[8,16,16], index: 1, kind: input, shape index: {}]
  %s2 = inlined_call_operand.hbm [shape: f32[16,16], index: 2, kind: input, shape index: {}]
  %s3 = inlined_call_operand.hbm [shape: f32[16,16], index: 3, kind: input, shape index: {}]
  %s4 = inlined_call_operand.hbm [shape: f32[16,128], index: 4, kind: input, shape index: {}]
  %s5 = inlined_call_operand.vmem [shape: f32[16,128], index: 5, kind: input, shape index: {}]
  %s6 = inlined_call_operand.hbm [shape: f32[1,8,128], index: 6, kind: output, shape index: {}]
  %s7 = sld [smem:[#allocation0]]
  $region58: #{tpu_custom_call.1} parent=0
    _
  %s9 = ssub.s32 1, %s7
  %s10 = scalar_select 0, %s9, %s7
  $region1: #{tpu_custom_call.1} parent=0
    #allocation2 [shape = 'u8[65536]{0}', space=vmem, size = 0x10000, scoped, tag = 'input window, operand 0, single buffered']
    #allocation3 [shape = 's32[1]{0}', space=sflag, size = 0x4, scoped, tag = 'scoped memory for tpu_custom_call.1']
    #allocation4 [shape = 's32[1]{0}', space=sflag, size = 0x4, scoped, tag = 'scoped memory for tpu_custom_call.1']
    #allocation5 [shape = 'u8[65536]{0}', space=vmem, size = 0x10000, scoped, tag = 'input window, operand 1, single buffered']
    #allocation6 [shape = 's32[1]{0}', space=sflag, size = 0x4, scoped, tag = 'scoped memory for tpu_custom_call.1']
    #allocation7 [shape = 'u8[8192]{0}', space=vmem, size = 0x2000, scoped, tag = 'input window, operand 2, single buffered']
    #allocation8 [shape = 'u8[8192]{0}', space=vmem, size = 0x2000, scoped, tag = 'input window, operand 3, single buffered']
    #allocation9 [shape = 's32[1]{0}', space=sflag, size = 0x4, scoped, tag = 'scoped memory for tpu_custom_call.1']
    #allocation10 [shape = 'u8[8192]{0}', space=vmem, size = 0x2000, scoped, tag = 'input window, operand 4, single buffered']
    #allocation11 [shape = 'u8[4096]{0}', space=vmem, size = 0x1000, scoped, tag = 'output window, operand 0, single buffered']
    %11 = vsyncpa [#allocation3], 0
    %12 = vsyncpa [#allocation6], 0
    %13 = vsyncpa [#allocation9], 0
    %14 = vsyncpa [#allocation4], 0
    // Predicated region
    $region2: #{tpu_custom_call.1} parent=1 // pred_check
      _
    $region3: #{tpu_custom_call.1} parent=1 // pred_check_branch
      %16 = sbr.rel (0) target = $region5
    $region4: #{tpu_custom_call.1} parent=1 // pred_region
      %s17 = sadd.s32 0, 0
      %s18 = smul.u32 8, %s17
      %s20 = ssub.s32 2048, 2048
      %21 = vsyncadd [#allocation3], %s20
      %s22 = smul.addr %s18, 2
      %s23 = smul.addr %s22, 128
      %s24 = scalar_lea.hbm %s0, %s23
      %s25 = sshll.u32 [#allocation2], 4
      %s26 = int_to_ptr.vmem [resolvable:$true] %s25
      %31 = dma.hbm_to_vmem [thread:$0]  %s24, 2048, %s26, [#allocation3], 128, 128, 8
    $region5: #{tpu_custom_call.1} parent=1 // pred_fallthru
      _
    // Predicated region
    $region6: #{tpu_custom_call.1} parent=1 // pred_check
      _
    $region7: #{tpu_custom_call.1} parent=1 // pred_check_branch
      %33 = sbr.rel (0) target = $region9
    $region8: #{tpu_custom_call.1} parent=1 // pred_region
      %s34 = sadd.s32 0, 0
      %s35 = smul.u32 8, %s34
      %s37 = ssub.s32 2048, 2048
      %38 = vsyncadd [#allocation6], %s37
      %s39 = smul.addr %s35, 2
      %s40 = smul.addr %s39, 128
      %s41 = scalar_lea.hbm %s1, %s40
      %s42 = sshll.u32 [#allocation5], 4
      %s43 = int_to_ptr.vmem [resolvable:$true] %s42
      %48 = dma.hbm_to_vmem [thread:$0]  %s41, 2048, %s43, [#allocation6], 128, 128, 8
    $region9: #{tpu_custom_call.1} parent=1 // pred_fallthru
      _
    // Predicated region
    $region10: #{tpu_custom_call.1} parent=1 // pred_check
      _
    $region11: #{tpu_custom_call.1} parent=1 // pred_check_branch
      %50 = sbr.rel (0) target = $region13
    $region12: #{tpu_custom_call.1} parent=1 // pred_region
      %s52 = ssub.s32 256, 256
      %53 = vsyncadd [#allocation6], %s52
      %s54 = sshll.u32 [#allocation7], 4
      %s55 = int_to_ptr.vmem [resolvable:$true] %s54
      %60 = dma.hbm_to_vmem [thread:$0]  %s2, 256, %s55, [#allocation6], 128, 128, 8
    $region13: #{tpu_custom_call.1} parent=1 // pred_fallthru
      _
    // Predicated region
    $region14: #{tpu_custom_call.1} parent=1 // pred_check
      _
    $region15: #{tpu_custom_call.1} parent=1 // pred_check_branch
      %62 = sbr.rel (0) target = $region17
    $region16: #{tpu_custom_call.1} parent=1 // pred_region
      %s64 = ssub.s32 256, 256
      %65 = vsyncadd [#allocation9], %s64
      %s66 = sshll.u32 [#allocation8], 4
      %s67 = int_to_ptr.vmem [resolvable:$true] %s66
      %72 = dma.hbm_to_vmem [thread:$0]  %s3, 256, %s67, [#allocation9], 128, 128, 8
    $region17: #{tpu_custom_call.1} parent=1 // pred_fallthru
      _
    // Predicated region
    $region18: #{tpu_custom_call.1} parent=1 // pred_check
      _
    $region19: #{tpu_custom_call.1} parent=1 // pred_check_branch
      %74 = sbr.rel (0) target = $region21
    $region20: #{tpu_custom_call.1} parent=1 // pred_region
      %s76 = ssub.s32 256, 256
      %77 = vsyncadd [#allocation9], %s76
      %s78 = sshll.u32 [#allocation10], 4
      %s79 = int_to_ptr.vmem [resolvable:$true] %s78
      %84 = dma.hbm_to_vmem [thread:$0]  %s4, 256, %s79, [#allocation9], 128, 128, 8
    $region21: #{tpu_custom_call.1} parent=1 // pred_fallthru
      _
    // Predicated region
    $region22: #{tpu_custom_call.1} parent=1 // pred_check
      _
    $region23: #{tpu_custom_call.1} parent=1 // pred_check_branch
      %86 = sbr.rel (0) target = $region25
    $region24: #{tpu_custom_call.1} parent=1 // pred_region
      _
    $region25: #{tpu_custom_call.1} parent=1 // pred_fallthru
      _
    // Predicated region
    $region26: #{tpu_custom_call.1} parent=1 // pred_check
      _
    $region27: #{tpu_custom_call.1} parent=1 // pred_check_branch
      %88 = sbr.rel (0) target = $region29
    $region28: #{tpu_custom_call.1} parent=1 // pred_region
      %89 = dma.done [#allocation3], 2048
    $region29: #{tpu_custom_call.1} parent=1 // pred_fallthru
      _
    // Predicated region
    $region30: #{tpu_custom_call.1} parent=1 // pred_check
      _
    $region31: #{tpu_custom_call.1} parent=1 // pred_check_branch
      %91 = sbr.rel (0) target = $region33
    $region32: #{tpu_custom_call.1} parent=1 // pred_region
      %92 = dma.done [#allocation6], 2048
    $region33: #{tpu_custom_call.1} parent=1 // pred_fallthru
      _
    // Predicated region
    $region34: #{tpu_custom_call.1} parent=1 // pred_check
      _
    $region35: #{tpu_custom_call.1} parent=1 // pred_check_branch
      %94 = sbr.rel (0) target = $region37
    $region36: #{tpu_custom_call.1} parent=1 // pred_region
      %95 = dma.done [#allocation6], 256
    $region37: #{tpu_custom_call.1} parent=1 // pred_fallthru
      _
    // Predicated region
    $region38: #{tpu_custom_call.1} parent=1 // pred_check
      _
    $region39: #{tpu_custom_call.1} parent=1 // pred_check_branch
      %97 = sbr.rel (0) target = $region41
    $region40: #{tpu_custom_call.1} parent=1 // pred_region
      %98 = dma.done [#allocation9], 256
    $region41: #{tpu_custom_call.1} parent=1 // pred_fallthru
      _
    // Predicated region
    $region42: #{tpu_custom_call.1} parent=1 // pred_check
      _
    $region43: #{tpu_custom_call.1} parent=1 // pred_check_branch
      %100 = sbr.rel (0) target = $region45
    $region44: #{tpu_custom_call.1} parent=1 // pred_region
      %101 = dma.done [#allocation9], 256
    $region45: #{tpu_custom_call.1} parent=1 // pred_fallthru
      _
    %s102 = sadd.s32 0, 0
    %s103 = smul.u32 8, %s102
    %s104 = sadd.s32 0, 0
    %s105 = smul.u32 8, %s104
    %p106 = scmp.eq.s32.totalorder 0, 0
    // Predicated region
    $region46: #{tpu_custom_call.1} parent=1 // pred_check
      %p107 = pneg %p106
    $region47: #{tpu_custom_call.1} parent=1 // pred_check_branch
      %109 = sbr.rel (%p107) target = $region49
    $region48: #{tpu_custom_call.1} parent=1 // pred_region
      %110 = vst [vmem:[#allocation11] sm:$0xff] 0.0
    $region49: #{tpu_custom_call.1} parent=1 // pred_fallthru
      _
    %v111 = vld [vmem:[#allocation2] sm:$0xff]
    %v112 = vld [vmem:[#allocation2 + $0x8] sm:$0xff]
    %v113 = vld [vmem:[#allocation2 + $0x10] sm:$0xff]
    %v114 = vld [vmem:[#allocation2 + $0x18] sm:$0xff]
    %v115 = vld [vmem:[#allocation2 + $0x20] sm:$0xff]
    %v116 = vld [vmem:[#allocation2 + $0x28] sm:$0xff]
    %v117 = vld [vmem:[#allocation2 + $0x30] sm:$0xff]
    %v118 = vld [vmem:[#allocation2 + $0x38] sm:$0xff]
    %v119 = vld [vmem:[#allocation2 + $0x40] sm:$0xff]
    %v120 = vld [vmem:[#allocation2 + $0x48] sm:$0xff]
    %v121 = vld [vmem:[#allocation2 + $0x50] sm:$0xff]
    %v122 = vld [vmem:[#allocation2 + $0x58] sm:$0xff]
    %v123 = vld [vmem:[#allocation2 + $0x60] sm:$0xff]
    %v124 = vld [vmem:[#allocation2 + $0x68] sm:$0xff]
    %v125 = vld [vmem:[#allocation2 + $0x70] sm:$0xff]
    %v126 = vld [vmem:[#allocation2 + $0x78] sm:$0xff]
    %v127 = vld [vmem:[#allocation5] sm:$0xff]
    %v128 = vld [vmem:[#allocation5 + $0x8] sm:$0xff]
    %v129 = vld [vmem:[#allocation5 + $0x10] sm:$0xff]
    %v130 = vld [vmem:[#allocation5 + $0x18] sm:$0xff]
    %v131 = vld [vmem:[#allocation5 + $0x20] sm:$0xff]
    %v132 = vld [vmem:[#allocation5 + $0x28] sm:$0xff]
    %v133 = vld [vmem:[#allocation5 + $0x30] sm:$0xff]
    %v134 = vld [vmem:[#allocation5 + $0x38] sm:$0xff]
    %v135 = vld [vmem:[#allocation5 + $0x40] sm:$0xff]
    %v136 = vld [vmem:[#allocation5 + $0x48] sm:$0xff]
    %v137 = vld [vmem:[#allocation5 + $0x50] sm:$0xff]
    %v138 = vld [vmem:[#allocation5 + $0x58] sm:$0xff]
    %v139 = vld [vmem:[#allocation5 + $0x60] sm:$0xff]
    %v140 = vld [vmem:[#allocation5 + $0x68] sm:$0xff]
    %v141 = vld [vmem:[#allocation5 + $0x70] sm:$0xff]
    %v142 = vld [vmem:[#allocation5 + $0x78] sm:$0xff]
    %v143 = vsub.f32 %v111, %v127
    %v144 = vsub.f32 %v112, %v128
    %v145 = vsub.f32 %v113, %v129
    %v146 = vsub.f32 %v114, %v130
    %v147 = vsub.f32 %v115, %v131
    %v148 = vsub.f32 %v116, %v132
    %v149 = vsub.f32 %v117, %v133
    %v150 = vsub.f32 %v118, %v134
    %v151 = vsub.f32 %v119, %v135
    %v152 = vsub.f32 %v120, %v136
    %v153 = vsub.f32 %v121, %v137
    %v154 = vsub.f32 %v122, %v138
    %v155 = vsub.f32 %v123, %v139
    %v156 = vsub.f32 %v124, %v140
    %v157 = vsub.f32 %v125, %v141
    %v158 = vsub.f32 %v126, %v142
    %v159 = vld [vmem:[#allocation10] sm:$0xff]
    %v160 = vld [vmem:[#allocation10 + $0x8] sm:$0xff]
    %vm161 = vcmask 130048
    %v163 = vsel %vm161, %v143, 0
    %v166 = vsel %vm161, %v144, 0
    %v169 = vsel %vm161, %v145, 0
    %v172 = vsel %vm161, %v146, 0
    %v175 = vsel %vm161, %v147, 0
    %v178 = vsel %vm161, %v148, 0
    %v181 = vsel %vm161, %v149, 0
    %v184 = vsel %vm161, %v150, 0
    %v187 = vsel %vm161, %v151, 0
    %v190 = vsel %vm161, %v152, 0
    %v193 = vsel %vm161, %v153, 0
    %v196 = vsel %vm161, %v154, 0
    %v199 = vsel %vm161, %v155, 0
    %v202 = vsel %vm161, %v156, 0
    %v205 = vsel %vm161, %v157, 0
    %v208 = vsel %vm161, %v158, 0
    %210 = vmatprep.subr.mxu0 0.0
    %211 = vmatpush1.msra.mxu0 %v159
    %212 = vmatprep.subr.mxu0 0.0
    %213 = vmatpush1.msra.mxu0 %v160
    %214 = vmatprep.subr.mxu0 0.0
    %215 = vmatpush1.msra.mxu0 0.0
    %216 = vmatprep.subr.mxu0 0.0
    %217 = vmatpush1.msra.mxu0 0.0
    %218 = vmatprep.subr.mxu0 0.0
    %219 = vmatpush1.msra.mxu0 0.0
    %220 = vmatprep.subr.mxu0 0.0
    %221 = vmatpush1.msra.mxu0 0.0
    %222 = vmatprep.subr.mxu0 0.0
    %223 = vmatpush1.msra.mxu0 0.0
    %224 = vmatprep.subr.mxu0 0.0
    %225 = vmatpush1.msra.mxu0 0.0
    %226 = vmatprep.subr.mxu0 0.0
    %227 = vmatpush1.msra.mxu0 0.0
    %228 = vmatprep.subr.mxu0 0.0
    %229 = vmatpush1.msra.mxu0 0.0
    %230 = vmatprep.subr.mxu0 0.0
    %231 = vmatpush1.msra.mxu0 0.0
    %232 = vmatprep.subr.mxu0 0.0
    %233 = vmatpush1.msra.mxu0 0.0
    %234 = vmatprep.subr.mxu0 0.0
    %235 = vmatpush1.msra.mxu0 0.0
    %236 = vmatprep.subr.mxu0 0.0
    %237 = vmatpush1.msra.mxu0 0.0
    %238 = vmatprep.subr.mxu0 0.0
    %239 = vmatpush1.msra.mxu0 0.0
    %240 = vmatprep.subr.mxu0 0.0
    %241 = vmatpush1.msra.mxu0 0.0
    %242 = vmatprep.subr.mxu0 0.0
    %243 = vmatpush1.msra.mxu0 0.0
    %244 = vmatprep.subr.mxu0 0.0
    %245 = vmatpush1.msra.mxu0 0.0
    %246 = vmatprep.subr.mxu0 0.0
    %247 = vmatpush1.msra.mxu0 0.0
    %248 = vmatprep.subr.mxu0 0.0
    %249 = vmatpush1.msra.mxu0 0.0
    %250 = vmatprep.subr.mxu0 0.0
    %251 = vmatpush1.msra.mxu0 0.0
    %252 = vmatprep.subr.mxu0 0.0
    %253 = vmatpush1.msra.mxu0 0.0
    %254 = vmatprep.subr.mxu0 0.0
    %255 = vmatpush1.msra.mxu0 0.0
    %256 = vmatprep.subr.mxu0 0.0
    %257 = vmatpush1.msra.mxu0 0.0
    %258 = vmatprep.subr.mxu0 0.0
    %259 = vmatpush1.msra.mxu0 0.0
    %260 = vmatprep.subr.mxu0 0.0
    %261 = vmatpush1.msra.mxu0 0.0
    %262 = vmatprep.subr.mxu0 0.0
    %263 = vmatpush1.msra.mxu0 0.0
    %264 = vmatprep.subr.mxu0 0.0
    %265 = vmatpush1.msra.mxu0 0.0
    %266 = vmatprep.subr.mxu0 0.0
    %267 = vmatpush1.msra.mxu0 0.0
    %268 = vmatprep.subr.mxu0 0.0
    %269 = vmatpush1.msra.mxu0 0.0
    %270 = vmatprep.subr.mxu0 0.0
    %271 = vmatpush1.msra.mxu0 0.0
    %272 = vmatprep.subr.mxu0 0.0
    %273 = vmatpush1.msra.mxu0 0.0
    %274 = vmatprep.mubr.f32.mxu0 0.0
    %275 = vmatmul.mubr.f32.gmra.mrb[0].mxu0 %v163
    %v276 = vpop.f32.mrb[0].mxu0
    %v277 = vadd.f32 0.0, %v276
    %v278 = vpop.f32.mrb[0].mxu0
    %279 = vmatprep.mubr.f32.mxu0 0.0
    %280 = vmatmul.mubr.f32.gmra.mrb[0].mxu0 %v166
    %v281 = vpop.f32.mrb[0].mxu0
    %v282 = vadd.f32 0.0, %v281
    %v283 = vpop.f32.mrb[0].mxu0
    %284 = vmatprep.mubr.f32.mxu0 0.0
    %285 = vmatmul.mubr.f32.gmra.mrb[0].mxu0 %v169
    %v286 = vpop.f32.mrb[0].mxu0
    %v287 = vadd.f32 0.0, %v286
    %v288 = vpop.f32.mrb[0].mxu0
    %289 = vmatprep.mubr.f32.mxu0 0.0
    %290 = vmatmul.mubr.f32.gmra.mrb[0].mxu0 %v172
    %v291 = vpop.f32.mrb[0].mxu0
    %v292 = vadd.f32 0.0, %v291
    %v293 = vpop.f32.mrb[0].mxu0
    %294 = vmatprep.mubr.f32.mxu0 0.0
    %295 = vmatmul.mubr.f32.gmra.mrb[0].mxu0 %v175
    %v296 = vpop.f32.mrb[0].mxu0
    %v297 = vadd.f32 0.0, %v296
    %v298 = vpop.f32.mrb[0].mxu0
    %299 = vmatprep.mubr.f32.mxu0 0.0
    %300 = vmatmul.mubr.f32.gmra.mrb[0].mxu0 %v178
    %v301 = vpop.f32.mrb[0].mxu0
    %v302 = vadd.f32 0.0, %v301
    %v303 = vpop.f32.mrb[0].mxu0
    %304 = vmatprep.mubr.f32.mxu0 0.0
    %305 = vmatmul.mubr.f32.gmra.mrb[0].mxu0 %v181
    %v306 = vpop.f32.mrb[0].mxu0
    %v307 = vadd.f32 0.0, %v306
    %v308 = vpop.f32.mrb[0].mxu0
    %309 = vmatprep.mubr.f32.mxu0 0.0
    %310 = vmatmul.mubr.f32.gmra.mrb[0].mxu0 %v184
    %v311 = vpop.f32.mrb[0].mxu0
    %v312 = vadd.f32 0.0, %v311
    %v313 = vpop.f32.mrb[0].mxu0
    %314 = vmatprep.mubr.f32.mxu0 0.0
    %315 = vmatmul.mubr.f32.gmra.mrb[0].mxu0 %v187
    %v316 = vpop.f32.mrb[0].mxu0
    %v317 = vadd.f32 0.0, %v316
    %v318 = vpop.f32.mrb[0].mxu0
    %319 = vmatprep.mubr.f32.mxu0 0.0
    %320 = vmatmul.mubr.f32.gmra.mrb[0].mxu0 %v190
    %v321 = vpop.f32.mrb[0].mxu0
    %v322 = vadd.f32 0.0, %v321
    %v323 = vpop.f32.mrb[0].mxu0
    %324 = vmatprep.mubr.f32.mxu0 0.0
    %325 = vmatmul.mubr.f32.gmra.mrb[0].mxu0 %v193
    %v326 = vpop.f32.mrb[0].mxu0
    %v327 = vadd.f32 0.0, %v326
    %v328 = vpop.f32.mrb[0].mxu0
    %329 = vmatprep.mubr.f32.mxu0 0.0
    %330 = vmatmul.mubr.f32.gmra.mrb[0].mxu0 %v196
    %v331 = vpop.f32.mrb[0].mxu0
    %v332 = vadd.f32 0.0, %v331
    %v333 = vpop.f32.mrb[0].mxu0
    %334 = vmatprep.mubr.f32.mxu0 0.0
    %335 = vmatmul.mubr.f32.gmra.mrb[0].mxu0 %v199
    %v336 = vpop.f32.mrb[0].mxu0
    %v337 = vadd.f32 0.0, %v336
    %v338 = vpop.f32.mrb[0].mxu0
    %339 = vmatprep.mubr.f32.mxu0 0.0
    %340 = vmatmul.mubr.f32.gmra.mrb[0].mxu0 %v202
    %v341 = vpop.f32.mrb[0].mxu0
    %v342 = vadd.f32 0.0, %v341
    %v343 = vpop.f32.mrb[0].mxu0
    %344 = vmatprep.mubr.f32.mxu0 0.0
    %345 = vmatmul.mubr.f32.gmra.mrb[0].mxu0 %v205
    %v346 = vpop.f32.mrb[0].mxu0
    %v347 = vadd.f32 0.0, %v346
    %v348 = vpop.f32.mrb[0].mxu0
    %349 = vmatprep.mubr.f32.mxu0 0.0
    %350 = vmatmul.mubr.f32.gmra.mrb[0].mxu0 %v208
    %v351 = vpop.f32.mrb[0].mxu0
    %v352 = vadd.f32 0.0, %v351
    %v353 = vpop.f32.mrb[0].mxu0
    %354 = vdwg.mxu0
    %v355 = vld [vmem:[%s5] sm:$0xff]
    %v356 = vld [vmem:[%s5 + $0x8] sm:$0xff]
    %357 = vmatprep.subr.mxu0 0.0
    %358 = vmatpush1.msra.mxu0 %v355
    %359 = vmatprep.subr.mxu0 0.0
    %360 = vmatpush1.msra.mxu0 %v356
    %361 = vmatprep.subr.mxu0 0.0
    %362 = vmatpush1.msra.mxu0 0.0
    %363 = vmatprep.subr.mxu0 0.0
    %364 = vmatpush1.msra.mxu0 0.0
    %365 = vmatprep.subr.mxu0 0.0
    %366 = vmatpush1.msra.mxu0 0.0
    %367 = vmatprep.subr.mxu0 0.0
    %368 = vmatpush1.msra.mxu0 0.0
    %369 = vmatprep.subr.mxu0 0.0
    %370 = vmatpush1.msra.mxu0 0.0
    %371 = vmatprep.subr.mxu0 0.0
    %372 = vmatpush1.msra.mxu0 0.0
    %373 = vmatprep.subr.mxu0 0.0
    %374 = vmatpush1.msra.mxu0 0.0
    %375 = vmatprep.subr.mxu0 0.0
    %376 = vmatpush1.msra.mxu0 0.0
    %377 = vmatprep.subr.mxu0 0.0
    %378 = vmatpush1.msra.mxu0 0.0
    %379 = vmatprep.subr.mxu0 0.0
    %380 = vmatpush1.msra.mxu0 0.0
    %381 = vmatprep.subr.mxu0 0.0
    %382 = vmatpush1.msra.mxu0 0.0
    %383 = vmatprep.subr.mxu0 0.0
    %384 = vmatpush1.msra.mxu0 0.0
    %385 = vmatprep.subr.mxu0 0.0
    %386 = vmatpush1.msra.mxu0 0.0
    %387 = vmatprep.subr.mxu0 0.0
    %388 = vmatpush1.msra.mxu0 0.0
    %389 = vmatprep.subr.mxu0 0.0
    %390 = vmatpush1.msra.mxu0 0.0
    %391 = vmatprep.subr.mxu0 0.0
    %392 = vmatpush1.msra.mxu0 0.0
    %393 = vmatprep.subr.mxu0 0.0
    %394 = vmatpush1.msra.mxu0 0.0
    %395 = vmatprep.subr.mxu0 0.0
    %396 = vmatpush1.msra.mxu0 0.0
    %397 = vmatprep.subr.mxu0 0.0
    %398 = vmatpush1.msra.mxu0 0.0
    %399 = vmatprep.subr.mxu0 0.0
    %400 = vmatpush1.msra.mxu0 0.0
    %401 = vmatprep.subr.mxu0 0.0
    %402 = vmatpush1.msra.mxu0 0.0
    %403 = vmatprep.subr.mxu0 0.0
    %404 = vmatpush1.msra.mxu0 0.0
    %405 = vmatprep.subr.mxu0 0.0
    %406 = vmatpush1.msra.mxu0 0.0
    %407 = vmatprep.subr.mxu0 0.0
    %408 = vmatpush1.msra.mxu0 0.0
    %409 = vmatprep.subr.mxu0 0.0
    %410 = vmatpush1.msra.mxu0 0.0
    %411 = vmatprep.subr.mxu0 0.0
    %412 = vmatpush1.msra.mxu0 0.0
    %413 = vmatprep.subr.mxu0 0.0
    %414 = vmatpush1.msra.mxu0 0.0
    %415 = vmatprep.subr.mxu0 0.0
    %416 = vmatpush1.msra.mxu0 0.0
    %417 = vmatprep.subr.mxu0 0.0
    %418 = vmatpush1.msra.mxu0 0.0
    %419 = vmatprep.subr.mxu0 0.0
    %420 = vmatpush1.msra.mxu0 0.0
    %421 = vmatprep.mubr.f32.mxu0 0.0
    %422 = vmatmul.mubr.f32.gmra.mrb[0].mxu0 %v163
    %v423 = vpop.f32.mrb[0].mxu0
    %v424 = vadd.f32 0.0, %v423
    %v425 = vpop.f32.mrb[0].mxu0
    %426 = vmatprep.mubr.f32.mxu0 0.0
    %427 = vmatmul.mubr.f32.gmra.mrb[0].mxu0 %v166
    %v428 = vpop.f32.mrb[0].mxu0
    %v429 = vadd.f32 0.0, %v428
    %v430 = vpop.f32.mrb[0].mxu0
    %431 = vmatprep.mubr.f32.mxu0 0.0
    %432 = vmatmul.mubr.f32.gmra.mrb[0].mxu0 %v169
    %v433 = vpop.f32.mrb[0].mxu0
    %v434 = vadd.f32 0.0, %v433
    %v435 = vpop.f32.mrb[0].mxu0
    %436 = vmatprep.mubr.f32.mxu0 0.0
    %437 = vmatmul.mubr.f32.gmra.mrb[0].mxu0 %v172
    %v438 = vpop.f32.mrb[0].mxu0
    %v439 = vadd.f32 0.0, %v438
    %v440 = vpop.f32.mrb[0].mxu0
    %441 = vmatprep.mubr.f32.mxu0 0.0
    %442 = vmatmul.mubr.f32.gmra.mrb[0].mxu0 %v175
    %v443 = vpop.f32.mrb[0].mxu0
    %v444 = vadd.f32 0.0, %v443
    %v445 = vpop.f32.mrb[0].mxu0
    %446 = vmatprep.mubr.f32.mxu0 0.0
    %447 = vmatmul.mubr.f32.gmra.mrb[0].mxu0 %v178
    %v448 = vpop.f32.mrb[0].mxu0
    %v449 = vadd.f32 0.0, %v448
    %v450 = vpop.f32.mrb[0].mxu0
    %451 = vmatprep.mubr.f32.mxu0 0.0
    %452 = vmatmul.mubr.f32.gmra.mrb[0].mxu0 %v181
    %v453 = vpop.f32.mrb[0].mxu0
    %v454 = vadd.f32 0.0, %v453
    %v455 = vpop.f32.mrb[0].mxu0
    %456 = vmatprep.mubr.f32.mxu0 0.0
    %457 = vmatmul.mubr.f32.gmra.mrb[0].mxu0 %v184
    %v458 = vpop.f32.mrb[0].mxu0
    %v459 = vadd.f32 0.0, %v458
    %v460 = vpop.f32.mrb[0].mxu0
    %461 = vmatprep.mubr.f32.mxu0 0.0
    %462 = vmatmul.mubr.f32.gmra.mrb[0].mxu0 %v187
    %v463 = vpop.f32.mrb[0].mxu0
    %v464 = vadd.f32 0.0, %v463
    %v465 = vpop.f32.mrb[0].mxu0
    %466 = vmatprep.mubr.f32.mxu0 0.0
    %467 = vmatmul.mubr.f32.gmra.mrb[0].mxu0 %v190
    %v468 = vpop.f32.mrb[0].mxu0
    %v469 = vadd.f32 0.0, %v468
    %v470 = vpop.f32.mrb[0].mxu0
    %471 = vmatprep.mubr.f32.mxu0 0.0
    %472 = vmatmul.mubr.f32.gmra.mrb[0].mxu0 %v193
    %v473 = vpop.f32.mrb[0].mxu0
    %v474 = vadd.f32 0.0, %v473
    %v475 = vpop.f32.mrb[0].mxu0
    %476 = vmatprep.mubr.f32.mxu0 0.0
    %477 = vmatmul.mubr.f32.gmra.mrb[0].mxu0 %v196
    %v478 = vpop.f32.mrb[0].mxu0
    %v479 = vadd.f32 0.0, %v478
    %v480 = vpop.f32.mrb[0].mxu0
    %481 = vmatprep.mubr.f32.mxu0 0.0
    %482 = vmatmul.mubr.f32.gmra.mrb[0].mxu0 %v199
    %v483 = vpop.f32.mrb[0].mxu0
    %v484 = vadd.f32 0.0, %v483
    %v485 = vpop.f32.mrb[0].mxu0
    %486 = vmatprep.mubr.f32.mxu0 0.0
    %487 = vmatmul.mubr.f32.gmra.mrb[0].mxu0 %v202
    %v488 = vpop.f32.mrb[0].mxu0
    %v489 = vadd.f32 0.0, %v488
    %v490 = vpop.f32.mrb[0].mxu0
    %491 = vmatprep.mubr.f32.mxu0 0.0
    %492 = vmatmul.mubr.f32.gmra.mrb[0].mxu0 %v205
    %v493 = vpop.f32.mrb[0].mxu0
    %v494 = vadd.f32 0.0, %v493
    %v495 = vpop.f32.mrb[0].mxu0
    %496 = vmatprep.mubr.f32.mxu0 0.0
    %497 = vmatmul.mubr.f32.gmra.mrb[0].mxu0 %v208
    %v498 = vpop.f32.mrb[0].mxu0
    %v499 = vadd.f32 0.0, %v498
    %v500 = vpop.f32.mrb[0].mxu0
    %501 = vdwg.mxu0
    %v502 = vld [vmem:[#allocation7] sm:$0xff]
    %v503 = vld [vmem:[#allocation7 + $0x8] sm:$0xff]
    %v504 = vld [vmem:[#allocation8] sm:$0xff]
    %v505 = vld [vmem:[#allocation8 + $0x8] sm:$0xff]
    %v507 = vsel %vm161, %v502, 0
    %v510 = vsel %vm161, %v503, 0
    %512 = vmatprep.subr.mxu0 0.0
    %513 = vmatpush1.msra.mxu0 %v277
    %514 = vmatprep.subr.mxu0 0.0
    %515 = vmatpush1.msra.mxu0 %v282
    %516 = vmatprep.subr.mxu0 0.0
    %517 = vmatpush1.msra.mxu0 0.0
    %518 = vmatprep.subr.mxu0 0.0
    %519 = vmatpush1.msra.mxu0 0.0
    %520 = vmatprep.subr.mxu0 0.0
    %521 = vmatpush1.msra.mxu0 0.0
    %522 = vmatprep.subr.mxu0 0.0
    %523 = vmatpush1.msra.mxu0 0.0
    %524 = vmatprep.subr.mxu0 0.0
    %525 = vmatpush1.msra.mxu0 0.0
    %526 = vmatprep.subr.mxu0 0.0
    %527 = vmatpush1.msra.mxu0 0.0
    %528 = vmatprep.subr.mxu0 0.0
    %529 = vmatpush1.msra.mxu0 0.0
    %530 = vmatprep.subr.mxu0 0.0
    %531 = vmatpush1.msra.mxu0 0.0
    %532 = vmatprep.subr.mxu0 0.0
    %533 = vmatpush1.msra.mxu0 0.0
    %534 = vmatprep.subr.mxu0 0.0
    %535 = vmatpush1.msra.mxu0 0.0
    %536 = vmatprep.subr.mxu0 0.0
    %537 = vmatpush1.msra.mxu0 0.0
    %538 = vmatprep.subr.mxu0 0.0
    %539 = vmatpush1.msra.mxu0 0.0
    %540 = vmatprep.subr.mxu0 0.0
    %541 = vmatpush1.msra.mxu0 0.0
    %542 = vmatprep.subr.mxu0 0.0
    %543 = vmatpush1.msra.mxu0 0.0
    %544 = vmatprep.subr.mxu0 0.0
    %545 = vmatpush1.msra.mxu0 0.0
    %546 = vmatprep.subr.mxu0 0.0
    %547 = vmatpush1.msra.mxu0 0.0
    %548 = vmatprep.subr.mxu0 0.0
    %549 = vmatpush1.msra.mxu0 0.0
    %550 = vmatprep.subr.mxu0 0.0
    %551 = vmatpush1.msra.mxu0 0.0
    %552 = vmatprep.subr.mxu0 0.0
    %553 = vmatpush1.msra.mxu0 0.0
    %554 = vmatprep.subr.mxu0 0.0
    %555 = vmatpush1.msra.mxu0 0.0
    %556 = vmatprep.subr.mxu0 0.0
    %557 = vmatpush1.msra.mxu0 0.0
    %558 = vmatprep.subr.mxu0 0.0
    %559 = vmatpush1.msra.mxu0 0.0
    %560 = vmatprep.subr.mxu0 0.0
    %561 = vmatpush1.msra.mxu0 0.0
    %562 = vmatprep.subr.mxu0 0.0
    %563 = vmatpush1.msra.mxu0 0.0
    %564 = vmatprep.subr.mxu0 0.0
    %565 = vmatpush1.msra.mxu0 0.0
    %566 = vmatprep.subr.mxu0 0.0
    %567 = vmatpush1.msra.mxu0 0.0
    %568 = vmatprep.subr.mxu0 0.0
    %569 = vmatpush1.msra.mxu0 0.0
    %570 = vmatprep.subr.mxu0 0.0
    %571 = vmatpush1.msra.mxu0 0.0
    %572 = vmatprep.subr.mxu0 0.0
    %573 = vmatpush1.msra.mxu0 0.0
    %574 = vmatprep.subr.mxu0 0.0
    %575 = vmatpush1.msra.mxu0 0.0
    %576 = vmatprep.mubr.f32.mxu0 0.0
    %577 = vmatmul.mubr.f32.gmra.mrb[0].mxu0 %v507
    %v578 = vpop.f32.mrb[0].mxu0
    %v579 = vadd.f32 0.0, %v578
    %v580 = vpop.f32.mrb[0].mxu0
    %581 = vmatprep.mubr.f32.mxu0 0.0
    %582 = vmatmul.mubr.f32.gmra.mrb[0].mxu0 %v510
    %v583 = vpop.f32.mrb[0].mxu0
    %v584 = vadd.f32 0.0, %v583
    %v585 = vpop.f32.mrb[0].mxu0
    %586 = vdwg.mxu0
    %587 = vmatprep.subr.mxu0 0.0
    %588 = vmatpush1.msra.mxu0 %v287
    %589 = vmatprep.subr.mxu0 0.0
    %590 = vmatpush1.msra.mxu0 %v292
    %591 = vmatprep.subr.mxu0 0.0
    %592 = vmatpush1.msra.mxu0 0.0
    %593 = vmatprep.subr.mxu0 0.0
    %594 = vmatpush1.msra.mxu0 0.0
    %595 = vmatprep.subr.mxu0 0.0
    %596 = vmatpush1.msra.mxu0 0.0
    %597 = vmatprep.subr.mxu0 0.0
    %598 = vmatpush1.msra.mxu0 0.0
    %599 = vmatprep.subr.mxu0 0.0
    %600 = vmatpush1.msra.mxu0 0.0
    %601 = vmatprep.subr.mxu0 0.0
    %602 = vmatpush1.msra.mxu0 0.0
    %603 = vmatprep.subr.mxu0 0.0
    %604 = vmatpush1.msra.mxu0 0.0
    %605 = vmatprep.subr.mxu0 0.0
    %606 = vmatpush1.msra.mxu0 0.0
    %607 = vmatprep.subr.mxu0 0.0
    %608 = vmatpush1.msra.mxu0 0.0
    %609 = vmatprep.subr.mxu0 0.0
    %610 = vmatpush1.msra.mxu0 0.0
    %611 = vmatprep.subr.mxu0 0.0
    %612 = vmatpush1.msra.mxu0 0.0
    %613 = vmatprep.subr.mxu0 0.0
    %614 = vmatpush1.msra.mxu0 0.0
    %615 = vmatprep.subr.mxu0 0.0
    %616 = vmatpush1.msra.mxu0 0.0
    %617 = vmatprep.subr.mxu0 0.0
    %618 = vmatpush1.msra.mxu0 0.0
    %619 = vmatprep.subr.mxu0 0.0
    %620 = vmatpush1.msra.mxu0 0.0
    %621 = vmatprep.subr.mxu0 0.0
    %622 = vmatpush1.msra.mxu0 0.0
    %623 = vmatprep.subr.mxu0 0.0
    %624 = vmatpush1.msra.mxu0 0.0
    %625 = vmatprep.subr.mxu0 0.0
    %626 = vmatpush1.msra.mxu0 0.0
    %627 = vmatprep.subr.mxu0 0.0
    %628 = vmatpush1.msra.mxu0 0.0
    %629 = vmatprep.subr.mxu0 0.0
    %630 = vmatpush1.msra.mxu0 0.0
    %631 = vmatprep.subr.mxu0 0.0
    %632 = vmatpush1.msra.mxu0 0.0
    %633 = vmatprep.subr.mxu0 0.0
    %634 = vmatpush1.msra.mxu0 0.0
    %635 = vmatprep.subr.mxu0 0.0
    %636 = vmatpush1.msra.mxu0 0.0
    %637 = vmatprep.subr.mxu0 0.0
    %638 = vmatpush1.msra.mxu0 0.0
    %639 = vmatprep.subr.mxu0 0.0
    %640 = vmatpush1.msra.mxu0 0.0
    %641 = vmatprep.subr.mxu0 0.0
    %642 = vmatpush1.msra.mxu0 0.0
    %643 = vmatprep.subr.mxu0 0.0
    %644 = vmatpush1.msra.mxu0 0.0
    %645 = vmatprep.subr.mxu0 0.0
    %646 = vmatpush1.msra.mxu0 0.0
    %647 = vmatprep.subr.mxu0 0.0
    %648 = vmatpush1.msra.mxu0 0.0
    %649 = vmatprep.subr.mxu0 0.0
    %650 = vmatpush1.msra.mxu0 0.0
    %651 = vmatprep.mubr.f32.mxu0 0.0
    %652 = vmatmul.mubr.f32.gmra.mrb[0].mxu0 %v507
    %v653 = vpop.f32.mrb[0].mxu0
    %v654 = vadd.f32 0.0, %v653
    %v655 = vpop.f32.mrb[0].mxu0
    %656 = vmatprep.mubr.f32.mxu0 0.0
    %657 = vmatmul.mubr.f32.gmra.mrb[0].mxu0 %v510
    %v658 = vpop.f32.mrb[0].mxu0
    %v659 = vadd.f32 0.0, %v658
    %v660 = vpop.f32.mrb[0].mxu0
    %661 = vdwg.mxu0
    %662 = vmatprep.subr.mxu0 0.0
    %663 = vmatpush1.msra.mxu0 %v297
    %664 = vmatprep.subr.mxu0 0.0
    %665 = vmatpush1.msra.mxu0 %v302
    %666 = vmatprep.subr.mxu0 0.0
    %667 = vmatpush1.msra.mxu0 0.0
    %668 = vmatprep.subr.mxu0 0.0
    %669 = vmatpush1.msra.mxu0 0.0
    %670 = vmatprep.subr.mxu0 0.0
    %671 = vmatpush1.msra.mxu0 0.0
    %672 = vmatprep.subr.mxu0 0.0
    %673 = vmatpush1.msra.mxu0 0.0
    %674 = vmatprep.subr.mxu0 0.0
    %675 = vmatpush1.msra.mxu0 0.0
    %676 = vmatprep.subr.mxu0 0.0
    %677 = vmatpush1.msra.mxu0 0.0
    %678 = vmatprep.subr.mxu0 0.0
    %679 = vmatpush1.msra.mxu0 0.0
    %680 = vmatprep.subr.mxu0 0.0
    %681 = vmatpush1.msra.mxu0 0.0
    %682 = vmatprep.subr.mxu0 0.0
    %683 = vmatpush1.msra.mxu0 0.0
    %684 = vmatprep.subr.mxu0 0.0
    %685 = vmatpush1.msra.mxu0 0.0
    %686 = vmatprep.subr.mxu0 0.0
    %687 = vmatpush1.msra.mxu0 0.0
    %688 = vmatprep.subr.mxu0 0.0
    %689 = vmatpush1.msra.mxu0 0.0
    %690 = vmatprep.subr.mxu0 0.0
    %691 = vmatpush1.msra.mxu0 0.0
    %692 = vmatprep.subr.mxu0 0.0
    %693 = vmatpush1.msra.mxu0 0.0
    %694 = vmatprep.subr.mxu0 0.0
    %695 = vmatpush1.msra.mxu0 0.0
    %696 = vmatprep.subr.mxu0 0.0
    %697 = vmatpush1.msra.mxu0 0.0
    %698 = vmatprep.subr.mxu0 0.0
    %699 = vmatpush1.msra.mxu0 0.0
    %700 = vmatprep.subr.mxu0 0.0
    %701 = vmatpush1.msra.mxu0 0.0
    %702 = vmatprep.subr.mxu0 0.0
    %703 = vmatpush1.msra.mxu0 0.0
    %704 = vmatprep.subr.mxu0 0.0
    %705 = vmatpush1.msra.mxu0 0.0
    %706 = vmatprep.subr.mxu0 0.0
    %707 = vmatpush1.msra.mxu0 0.0
    %708 = vmatprep.subr.mxu0 0.0
    %709 = vmatpush1.msra.mxu0 0.0
    %710 = vmatprep.subr.mxu0 0.0
    %711 = vmatpush1.msra.mxu0 0.0
    %712 = vmatprep.subr.mxu0 0.0
    %713 = vmatpush1.msra.mxu0 0.0
    %714 = vmatprep.subr.mxu0 0.0
    %715 = vmatpush1.msra.mxu0 0.0
    %716 = vmatprep.subr.mxu0 0.0
    %717 = vmatpush1.msra.mxu0 0.0
    %718 = vmatprep.subr.mxu0 0.0
    %719 = vmatpush1.msra.mxu0 0.0
    %720 = vmatprep.subr.mxu0 0.0
    %721 = vmatpush1.msra.mxu0 0.0
    %722 = vmatprep.subr.mxu0 0.0
    %723 = vmatpush1.msra.mxu0 0.0
    %724 = vmatprep.subr.mxu0 0.0
    %725 = vmatpush1.msra.mxu0 0.0
    %726 = vmatprep.mubr.f32.mxu0 0.0
    %727 = vmatmul.mubr.f32.gmra.mrb[0].mxu0 %v507
    %v728 = vpop.f32.mrb[0].mxu0
    %v729 = vadd.f32 0.0, %v728
    %v730 = vpop.f32.mrb[0].mxu0
    %731 = vmatprep.mubr.f32.mxu0 0.0
    %732 = vmatmul.mubr.f32.gmra.mrb[0].mxu0 %v510
    %v733 = vpop.f32.mrb[0].mxu0
    %v734 = vadd.f32 0.0, %v733
    %v735 = vpop.f32.mrb[0].mxu0
    %736 = vdwg.mxu0
    %737 = vmatprep.subr.mxu0 0.0
    %738 = vmatpush1.msra.mxu0 %v307
    %739 = vmatprep.subr.mxu0 0.0
    %740 = vmatpush1.msra.mxu0 %v312
    %741 = vmatprep.subr.mxu0 0.0
    %742 = vmatpush1.msra.mxu0 0.0
    %743 = vmatprep.subr.mxu0 0.0
    %744 = vmatpush1.msra.mxu0 0.0
    %745 = vmatprep.subr.mxu0 0.0
    %746 = vmatpush1.msra.mxu0 0.0
    %747 = vmatprep.subr.mxu0 0.0
    %748 = vmatpush1.msra.mxu0 0.0
    %749 = vmatprep.subr.mxu0 0.0
    %750 = vmatpush1.msra.mxu0 0.0
    %751 = vmatprep.subr.mxu0 0.0
    %752 = vmatpush1.msra.mxu0 0.0
    %753 = vmatprep.subr.mxu0 0.0
    %754 = vmatpush1.msra.mxu0 0.0
    %755 = vmatprep.subr.mxu0 0.0
    %756 = vmatpush1.msra.mxu0 0.0
    %757 = vmatprep.subr.mxu0 0.0
    %758 = vmatpush1.msra.mxu0 0.0
    %759 = vmatprep.subr.mxu0 0.0
    %760 = vmatpush1.msra.mxu0 0.0
    %761 = vmatprep.subr.mxu0 0.0
    %762 = vmatpush1.msra.mxu0 0.0
    %763 = vmatprep.subr.mxu0 0.0
    %764 = vmatpush1.msra.mxu0 0.0
    %765 = vmatprep.subr.mxu0 0.0
    %766 = vmatpush1.msra.mxu0 0.0
    %767 = vmatprep.subr.mxu0 0.0
    %768 = vmatpush1.msra.mxu0 0.0
    %769 = vmatprep.subr.mxu0 0.0
    %770 = vmatpush1.msra.mxu0 0.0
    %771 = vmatprep.subr.mxu0 0.0
    %772 = vmatpush1.msra.mxu0 0.0
    %773 = vmatprep.subr.mxu0 0.0
    %774 = vmatpush1.msra.mxu0 0.0
    %775 = vmatprep.subr.mxu0 0.0
    %776 = vmatpush1.msra.mxu0 0.0
    %777 = vmatprep.subr.mxu0 0.0
    %778 = vmatpush1.msra.mxu0 0.0
    %779 = vmatprep.subr.mxu0 0.0
    %780 = vmatpush1.msra.mxu0 0.0
    %781 = vmatprep.subr.mxu0 0.0
    %782 = vmatpush1.msra.mxu0 0.0
    %783 = vmatprep.subr.mxu0 0.0
    %784 = vmatpush1.msra.mxu0 0.0
    %785 = vmatprep.subr.mxu0 0.0
    %786 = vmatpush1.msra.mxu0 0.0
    %787 = vmatprep.subr.mxu0 0.0
    %788 = vmatpush1.msra.mxu0 0.0
    %789 = vmatprep.subr.mxu0 0.0
    %790 = vmatpush1.msra.mxu0 0.0
    %791 = vmatprep.subr.mxu0 0.0
    %792 = vmatpush1.msra.mxu0 0.0
    %793 = vmatprep.subr.mxu0 0.0
    %794 = vmatpush1.msra.mxu0 0.0
    %795 = vmatprep.subr.mxu0 0.0
    %796 = vmatpush1.msra.mxu0 0.0
    %797 = vmatprep.subr.mxu0 0.0
    %798 = vmatpush1.msra.mxu0 0.0
    %799 = vmatprep.subr.mxu0 0.0
    %800 = vmatpush1.msra.mxu0 0.0
    %801 = vmatprep.mubr.f32.mxu0 0.0
    %802 = vmatmul.mubr.f32.gmra.mrb[0].mxu0 %v507
    %v803 = vpop.f32.mrb[0].mxu0
    %v804 = vadd.f32 0.0, %v803
    %v805 = vpop.f32.mrb[0].mxu0
    %806 = vmatprep.mubr.f32.mxu0 0.0
    %807 = vmatmul.mubr.f32.gmra.mrb[0].mxu0 %v510
    %v808 = vpop.f32.mrb[0].mxu0
    %v809 = vadd.f32 0.0, %v808
    %v810 = vpop.f32.mrb[0].mxu0
    %811 = vdwg.mxu0
    %812 = vmatprep.subr.mxu0 0.0
    %813 = vmatpush1.msra.mxu0 %v317
    %814 = vmatprep.subr.mxu0 0.0
    %815 = vmatpush1.msra.mxu0 %v322
    %816 = vmatprep.subr.mxu0 0.0
    %817 = vmatpush1.msra.mxu0 0.0
    %818 = vmatprep.subr.mxu0 0.0
    %819 = vmatpush1.msra.mxu0 0.0
    %820 = vmatprep.subr.mxu0 0.0
    %821 = vmatpush1.msra.mxu0 0.0
    %822 = vmatprep.subr.mxu0 0.0
    %823 = vmatpush1.msra.mxu0 0.0
    %824 = vmatprep.subr.mxu0 0.0
    %825 = vmatpush1.msra.mxu0 0.0
    %826 = vmatprep.subr.mxu0 0.0
    %827 = vmatpush1.msra.mxu0 0.0
    %828 = vmatprep.subr.mxu0 0.0
    %829 = vmatpush1.msra.mxu0 0.0
    %830 = vmatprep.subr.mxu0 0.0
    %831 = vmatpush1.msra.mxu0 0.0
    %832 = vmatprep.subr.mxu0 0.0
    %833 = vmatpush1.msra.mxu0 0.0
    %834 = vmatprep.subr.mxu0 0.0
    %835 = vmatpush1.msra.mxu0 0.0
    %836 = vmatprep.subr.mxu0 0.0
    %837 = vmatpush1.msra.mxu0 0.0
    %838 = vmatprep.subr.mxu0 0.0
    %839 = vmatpush1.msra.mxu0 0.0
    %840 = vmatprep.subr.mxu0 0.0
    %841 = vmatpush1.msra.mxu0 0.0
    %842 = vmatprep.subr.mxu0 0.0
    %843 = vmatpush1.msra.mxu0 0.0
    %844 = vmatprep.subr.mxu0 0.0
    %845 = vmatpush1.msra.mxu0 0.0
    %846 = vmatprep.subr.mxu0 0.0
    %847 = vmatpush1.msra.mxu0 0.0
    %848 = vmatprep.subr.mxu0 0.0
    %849 = vmatpush1.msra.mxu0 0.0
    %850 = vmatprep.subr.mxu0 0.0
    %851 = vmatpush1.msra.mxu0 0.0
    %852 = vmatprep.subr.mxu0 0.0
    %853 = vmatpush1.msra.mxu0 0.0
    %854 = vmatprep.subr.mxu0 0.0
    %855 = vmatpush1.msra.mxu0 0.0
    %856 = vmatprep.subr.mxu0 0.0
    %857 = vmatpush1.msra.mxu0 0.0
    %858 = vmatprep.subr.mxu0 0.0
    %859 = vmatpush1.msra.mxu0 0.0
    %860 = vmatprep.subr.mxu0 0.0
    %861 = vmatpush1.msra.mxu0 0.0
    %862 = vmatprep.subr.mxu0 0.0
    %863 = vmatpush1.msra.mxu0 0.0
    %864 = vmatprep.subr.mxu0 0.0
    %865 = vmatpush1.msra.mxu0 0.0
    %866 = vmatprep.subr.mxu0 0.0
    %867 = vmatpush1.msra.mxu0 0.0
    %868 = vmatprep.subr.mxu0 0.0
    %869 = vmatpush1.msra.mxu0 0.0
    %870 = vmatprep.subr.mxu0 0.0
    %871 = vmatpush1.msra.mxu0 0.0
    %872 = vmatprep.subr.mxu0 0.0
    %873 = vmatpush1.msra.mxu0 0.0
    %874 = vmatprep.subr.mxu0 0.0
    %875 = vmatpush1.msra.mxu0 0.0
    %876 = vmatprep.mubr.f32.mxu0 0.0
    %877 = vmatmul.mubr.f32.gmra.mrb[0].mxu0 %v507
    %v878 = vpop.f32.mrb[0].mxu0
    %v879 = vadd.f32 0.0, %v878
    %v880 = vpop.f32.mrb[0].mxu0
    %881 = vmatprep.mubr.f32.mxu0 0.0
    %882 = vmatmul.mubr.f32.gmra.mrb[0].mxu0 %v510
    %v883 = vpop.f32.mrb[0].mxu0
    %v884 = vadd.f32 0.0, %v883
    %v885 = vpop.f32.mrb[0].mxu0
    %886 = vdwg.mxu0
    %887 = vmatprep.subr.mxu0 0.0
    %888 = vmatpush1.msra.mxu0 %v327
    %889 = vmatprep.subr.mxu0 0.0
    %890 = vmatpush1.msra.mxu0 %v332
    %891 = vmatprep.subr.mxu0 0.0
    %892 = vmatpush1.msra.mxu0 0.0
    %893 = vmatprep.subr.mxu0 0.0
    %894 = vmatpush1.msra.mxu0 0.0
    %895 = vmatprep.subr.mxu0 0.0
    %896 = vmatpush1.msra.mxu0 0.0
    %897 = vmatprep.subr.mxu0 0.0
    %898 = vmatpush1.msra.mxu0 0.0
    %899 = vmatprep.subr.mxu0 0.0
    %900 = vmatpush1.msra.mxu0 0.0
    %901 = vmatprep.subr.mxu0 0.0
    %902 = vmatpush1.msra.mxu0 0.0
    %903 = vmatprep.subr.mxu0 0.0
    %904 = vmatpush1.msra.mxu0 0.0
    %905 = vmatprep.subr.mxu0 0.0
    %906 = vmatpush1.msra.mxu0 0.0
    %907 = vmatprep.subr.mxu0 0.0
    %908 = vmatpush1.msra.mxu0 0.0
    %909 = vmatprep.subr.mxu0 0.0
    %910 = vmatpush1.msra.mxu0 0.0
    %911 = vmatprep.subr.mxu0 0.0
    %912 = vmatpush1.msra.mxu0 0.0
    %913 = vmatprep.subr.mxu0 0.0
    %914 = vmatpush1.msra.mxu0 0.0
    %915 = vmatprep.subr.mxu0 0.0
    %916 = vmatpush1.msra.mxu0 0.0
    %917 = vmatprep.subr.mxu0 0.0
    %918 = vmatpush1.msra.mxu0 0.0
    %919 = vmatprep.subr.mxu0 0.0
    %920 = vmatpush1.msra.mxu0 0.0
    %921 = vmatprep.subr.mxu0 0.0
    %922 = vmatpush1.msra.mxu0 0.0
    %923 = vmatprep.subr.mxu0 0.0
    %924 = vmatpush1.msra.mxu0 0.0
    %925 = vmatprep.subr.mxu0 0.0
    %926 = vmatpush1.msra.mxu0 0.0
    %927 = vmatprep.subr.mxu0 0.0
    %928 = vmatpush1.msra.mxu0 0.0
    %929 = vmatprep.subr.mxu0 0.0
    %930 = vmatpush1.msra.mxu0 0.0
    %931 = vmatprep.subr.mxu0 0.0
    %932 = vmatpush1.msra.mxu0 0.0
    %933 = vmatprep.subr.mxu0 0.0
    %934 = vmatpush1.msra.mxu0 0.0
    %935 = vmatprep.subr.mxu0 0.0
    %936 = vmatpush1.msra.mxu0 0.0
    %937 = vmatprep.subr.mxu0 0.0
    %938 = vmatpush1.msra.mxu0 0.0
    %939 = vmatprep.subr.mxu0 0.0
    %940 = vmatpush1.msra.mxu0 0.0
    %941 = vmatprep.subr.mxu0 0.0
    %942 = vmatpush1.msra.mxu0 0.0
    %943 = vmatprep.subr.mxu0 0.0
    %944 = vmatpush1.msra.mxu0 0.0
    %945 = vmatprep.subr.mxu0 0.0
    %946 = vmatpush1.msra.mxu0 0.0
    %947 = vmatprep.subr.mxu0 0.0
    %948 = vmatpush1.msra.mxu0 0.0
    %949 = vmatprep.subr.mxu0 0.0
    %950 = vmatpush1.msra.mxu0 0.0
    %951 = vmatprep.mubr.f32.mxu0 0.0
    %952 = vmatmul.mubr.f32.gmra.mrb[0].mxu0 %v507
    %v953 = vpop.f32.mrb[0].mxu0
    %v954 = vadd.f32 0.0, %v953
    %v955 = vpop.f32.mrb[0].mxu0
    %956 = vmatprep.mubr.f32.mxu0 0.0
    %957 = vmatmul.mubr.f32.gmra.mrb[0].mxu0 %v510
    %v958 = vpop.f32.mrb[0].mxu0
    %v959 = vadd.f32 0.0, %v958
    %v960 = vpop.f32.mrb[0].mxu0
    %961 = vdwg.mxu0
    %962 = vmatprep.subr.mxu0 0.0
    %963 = vmatpush1.msra.mxu0 %v337
    %964 = vmatprep.subr.mxu0 0.0
    %965 = vmatpush1.msra.mxu0 %v342
    %966 = vmatprep.subr.mxu0 0.0
    %967 = vmatpush1.msra.mxu0 0.0
    %968 = vmatprep.subr.mxu0 0.0
    %969 = vmatpush1.msra.mxu0 0.0
    %970 = vmatprep.subr.mxu0 0.0
    %971 = vmatpush1.msra.mxu0 0.0
    %972 = vmatprep.subr.mxu0 0.0
    %973 = vmatpush1.msra.mxu0 0.0
    %974 = vmatprep.subr.mxu0 0.0
    %975 = vmatpush1.msra.mxu0 0.0
    %976 = vmatprep.subr.mxu0 0.0
    %977 = vmatpush1.msra.mxu0 0.0
    %978 = vmatprep.subr.mxu0 0.0
    %979 = vmatpush1.msra.mxu0 0.0
    %980 = vmatprep.subr.mxu0 0.0
    %981 = vmatpush1.msra.mxu0 0.0
    %982 = vmatprep.subr.mxu0 0.0
    %983 = vmatpush1.msra.mxu0 0.0
    %984 = vmatprep.subr.mxu0 0.0
    %985 = vmatpush1.msra.mxu0 0.0
    %986 = vmatprep.subr.mxu0 0.0
    %987 = vmatpush1.msra.mxu0 0.0
    %988 = vmatprep.subr.mxu0 0.0
    %989 = vmatpush1.msra.mxu0 0.0
    %990 = vmatprep.subr.mxu0 0.0
    %991 = vmatpush1.msra.mxu0 0.0
    %992 = vmatprep.subr.mxu0 0.0
    %993 = vmatpush1.msra.mxu0 0.0
    %994 = vmatprep.subr.mxu0 0.0
    %995 = vmatpush1.msra.mxu0 0.0
    %996 = vmatprep.subr.mxu0 0.0
    %997 = vmatpush1.msra.mxu0 0.0
    %998 = vmatprep.subr.mxu0 0.0
    %999 = vmatpush1.msra.mxu0 0.0
    %1000 = vmatprep.subr.mxu0 0.0
    %1001 = vmatpush1.msra.mxu0 0.0
    %1002 = vmatprep.subr.mxu0 0.0
    %1003 = vmatpush1.msra.mxu0 0.0
    %1004 = vmatprep.subr.mxu0 0.0
    %1005 = vmatpush1.msra.mxu0 0.0
    %1006 = vmatprep.subr.mxu0 0.0
    %1007 = vmatpush1.msra.mxu0 0.0
    %1008 = vmatprep.subr.mxu0 0.0
    %1009 = vmatpush1.msra.mxu0 0.0
    %1010 = vmatprep.subr.mxu0 0.0
    %1011 = vmatpush1.msra.mxu0 0.0
    %1012 = vmatprep.subr.mxu0 0.0
    %1013 = vmatpush1.msra.mxu0 0.0
    %1014 = vmatprep.subr.mxu0 0.0
    %1015 = vmatpush1.msra.mxu0 0.0
    %1016 = vmatprep.subr.mxu0 0.0
    %1017 = vmatpush1.msra.mxu0 0.0
    %1018 = vmatprep.subr.mxu0 0.0
    %1019 = vmatpush1.msra.mxu0 0.0
    %1020 = vmatprep.subr.mxu0 0.0
    %1021 = vmatpush1.msra.mxu0 0.0
    %1022 = vmatprep.subr.mxu0 0.0
    %1023 = vmatpush1.msra.mxu0 0.0
    %1024 = vmatprep.subr.mxu0 0.0
    %1025 = vmatpush1.msra.mxu0 0.0
    %1026 = vmatprep.mubr.f32.mxu0 0.0
    %1027 = vmatmul.mubr.f32.gmra.mrb[0].mxu0 %v507
    %v1028 = vpop.f32.mrb[0].mxu0
    %v1029 = vadd.f32 0.0, %v1028
    %v1030 = vpop.f32.mrb[0].mxu0
    %1031 = vmatprep.mubr.f32.mxu0 0.0
    %1032 = vmatmul.mubr.f32.gmra.mrb[0].mxu0 %v510
    %v1033 = vpop.f32.mrb[0].mxu0
    %v1034 = vadd.f32 0.0, %v1033
    %v1035 = vpop.f32.mrb[0].mxu0
    %1036 = vdwg.mxu0
    %1037 = vmatprep.subr.mxu0 0.0
    %1038 = vmatpush1.msra.mxu0 %v347
    %1039 = vmatprep.subr.mxu0 0.0
    %1040 = vmatpush1.msra.mxu0 %v352
    %1041 = vmatprep.subr.mxu0 0.0
    %1042 = vmatpush1.msra.mxu0 0.0
    %1043 = vmatprep.subr.mxu0 0.0
    %1044 = vmatpush1.msra.mxu0 0.0
    %1045 = vmatprep.subr.mxu0 0.0
    %1046 = vmatpush1.msra.mxu0 0.0
    %1047 = vmatprep.subr.mxu0 0.0
    %1048 = vmatpush1.msra.mxu0 0.0
    %1049 = vmatprep.subr.mxu0 0.0
    %1050 = vmatpush1.msra.mxu0 0.0
    %1051 = vmatprep.subr.mxu0 0.0
    %1052 = vmatpush1.msra.mxu0 0.0
    %1053 = vmatprep.subr.mxu0 0.0
    %1054 = vmatpush1.msra.mxu0 0.0
    %1055 = vmatprep.subr.mxu0 0.0
    %1056 = vmatpush1.msra.mxu0 0.0
    %1057 = vmatprep.subr.mxu0 0.0
    %1058 = vmatpush1.msra.mxu0 0.0
    %1059 = vmatprep.subr.mxu0 0.0
    %1060 = vmatpush1.msra.mxu0 0.0
    %1061 = vmatprep.subr.mxu0 0.0
    %1062 = vmatpush1.msra.mxu0 0.0
    %1063 = vmatprep.subr.mxu0 0.0
    %1064 = vmatpush1.msra.mxu0 0.0
    %1065 = vmatprep.subr.mxu0 0.0
    %1066 = vmatpush1.msra.mxu0 0.0
    %1067 = vmatprep.subr.mxu0 0.0
    %1068 = vmatpush1.msra.mxu0 0.0
    %1069 = vmatprep.subr.mxu0 0.0
    %1070 = vmatpush1.msra.mxu0 0.0
    %1071 = vmatprep.subr.mxu0 0.0
    %1072 = vmatpush1.msra.mxu0 0.0
    %1073 = vmatprep.subr.mxu0 0.0
    %1074 = vmatpush1.msra.mxu0 0.0
    %1075 = vmatprep.subr.mxu0 0.0
    %1076 = vmatpush1.msra.mxu0 0.0
    %1077 = vmatprep.subr.mxu0 0.0
    %1078 = vmatpush1.msra.mxu0 0.0
    %1079 = vmatprep.subr.mxu0 0.0
    %1080 = vmatpush1.msra.mxu0 0.0
    %1081 = vmatprep.subr.mxu0 0.0
    %1082 = vmatpush1.msra.mxu0 0.0
    %1083 = vmatprep.subr.mxu0 0.0
    %1084 = vmatpush1.msra.mxu0 0.0
    %1085 = vmatprep.subr.mxu0 0.0
    %1086 = vmatpush1.msra.mxu0 0.0
    %1087 = vmatprep.subr.mxu0 0.0
    %1088 = vmatpush1.msra.mxu0 0.0
    %1089 = vmatprep.subr.mxu0 0.0
    %1090 = vmatpush1.msra.mxu0 0.0
    %1091 = vmatprep.subr.mxu0 0.0
    %1092 = vmatpush1.msra.mxu0 0.0
    %1093 = vmatprep.subr.mxu0 0.0
    %1094 = vmatpush1.msra.mxu0 0.0
    %1095 = vmatprep.subr.mxu0 0.0
    %1096 = vmatpush1.msra.mxu0 0.0
    %1097 = vmatprep.subr.mxu0 0.0
    %1098 = vmatpush1.msra.mxu0 0.0
    %1099 = vmatprep.subr.mxu0 0.0
    %1100 = vmatpush1.msra.mxu0 0.0
    %1101 = vmatprep.mubr.f32.mxu0 0.0
    %1102 = vmatmul.mubr.f32.gmra.mrb[0].mxu0 %v507
    %v1103 = vpop.f32.mrb[0].mxu0
    %v1104 = vadd.f32 0.0, %v1103
    %v1105 = vpop.f32.mrb[0].mxu0
    %1106 = vmatprep.mubr.f32.mxu0 0.0
    %1107 = vmatmul.mubr.f32.gmra.mrb[0].mxu0 %v510
    %v1108 = vpop.f32.mrb[0].mxu0
    %v1109 = vadd.f32 0.0, %v1108
    %v1110 = vpop.f32.mrb[0].mxu0
    %1111 = vdwg.mxu0
    %v1113 = vsel %vm161, %v504, 0
    %v1116 = vsel %vm161, %v505, 0
    %1118 = vmatprep.subr.mxu0 0.0
    %1119 = vmatpush1.msra.mxu0 %v424
    %1120 = vmatprep.subr.mxu0 0.0
    %1121 = vmatpush1.msra.mxu0 %v429
    %1122 = vmatprep.subr.mxu0 0.0
    %1123 = vmatpush1.msra.mxu0 0.0
    %1124 = vmatprep.subr.mxu0 0.0
    %1125 = vmatpush1.msra.mxu0 0.0
    %1126 = vmatprep.subr.mxu0 0.0
    %1127 = vmatpush1.msra.mxu0 0.0
    %1128 = vmatprep.subr.mxu0 0.0
    %1129 = vmatpush1.msra.mxu0 0.0
    %1130 = vmatprep.subr.mxu0 0.0
    %1131 = vmatpush1.msra.mxu0 0.0
    %1132 = vmatprep.subr.mxu0 0.0
    %1133 = vmatpush1.msra.mxu0 0.0
    %1134 = vmatprep.subr.mxu0 0.0
    %1135 = vmatpush1.msra.mxu0 0.0
    %1136 = vmatprep.subr.mxu0 0.0
    %1137 = vmatpush1.msra.mxu0 0.0
    %1138 = vmatprep.subr.mxu0 0.0
    %1139 = vmatpush1.msra.mxu0 0.0
    %1140 = vmatprep.subr.mxu0 0.0
    %1141 = vmatpush1.msra.mxu0 0.0
    %1142 = vmatprep.subr.mxu0 0.0
    %1143 = vmatpush1.msra.mxu0 0.0
    %1144 = vmatprep.subr.mxu0 0.0
    %1145 = vmatpush1.msra.mxu0 0.0
    %1146 = vmatprep.subr.mxu0 0.0
    %1147 = vmatpush1.msra.mxu0 0.0
    %1148 = vmatprep.subr.mxu0 0.0
    %1149 = vmatpush1.msra.mxu0 0.0
    %1150 = vmatprep.subr.mxu0 0.0
    %1151 = vmatpush1.msra.mxu0 0.0
    %1152 = vmatprep.subr.mxu0 0.0
    %1153 = vmatpush1.msra.mxu0 0.0
    %1154 = vmatprep.subr.mxu0 0.0
    %1155 = vmatpush1.msra.mxu0 0.0
    %1156 = vmatprep.subr.mxu0 0.0
    %1157 = vmatpush1.msra.mxu0 0.0
    %1158 = vmatprep.subr.mxu0 0.0
    %1159 = vmatpush1.msra.mxu0 0.0
    %1160 = vmatprep.subr.mxu0 0.0
    %1161 = vmatpush1.msra.mxu0 0.0
    %1162 = vmatprep.subr.mxu0 0.0
    %1163 = vmatpush1.msra.mxu0 0.0
    %1164 = vmatprep.subr.mxu0 0.0
    %1165 = vmatpush1.msra.mxu0 0.0
    %1166 = vmatprep.subr.mxu0 0.0
    %1167 = vmatpush1.msra.mxu0 0.0
    %1168 = vmatprep.subr.mxu0 0.0
    %1169 = vmatpush1.msra.mxu0 0.0
    %1170 = vmatprep.subr.mxu0 0.0
    %1171 = vmatpush1.msra.mxu0 0.0
    %1172 = vmatprep.subr.mxu0 0.0
    %1173 = vmatpush1.msra.mxu0 0.0
    %1174 = vmatprep.subr.mxu0 0.0
    %1175 = vmatpush1.msra.mxu0 0.0
    %1176 = vmatprep.subr.mxu0 0.0
    %1177 = vmatpush1.msra.mxu0 0.0
    %1178 = vmatprep.subr.mxu0 0.0
    %1179 = vmatpush1.msra.mxu0 0.0
    %1180 = vmatprep.subr.mxu0 0.0
    %1181 = vmatpush1.msra.mxu0 0.0
    %1182 = vmatprep.mubr.f32.mxu0 0.0
    %1183 = vmatmul.mubr.f32.gmra.mrb[0].mxu0 %v1113
    %v1184 = vpop.f32.mrb[0].mxu0
    %v1185 = vadd.f32 0.0, %v1184
    %v1186 = vpop.f32.mrb[0].mxu0
    %1187 = vmatprep.mubr.f32.mxu0 0.0
    %1188 = vmatmul.mubr.f32.gmra.mrb[0].mxu0 %v1116
    %v1189 = vpop.f32.mrb[0].mxu0
    %v1190 = vadd.f32 0.0, %v1189
    %v1191 = vpop.f32.mrb[0].mxu0
    %1192 = vdwg.mxu0
    %1193 = vmatprep.subr.mxu0 0.0
    %1194 = vmatpush1.msra.mxu0 %v434
    %1195 = vmatprep.subr.mxu0 0.0
    %1196 = vmatpush1.msra.mxu0 %v439
    %1197 = vmatprep.subr.mxu0 0.0
    %1198 = vmatpush1.msra.mxu0 0.0
    %1199 = vmatprep.subr.mxu0 0.0
    %1200 = vmatpush1.msra.mxu0 0.0
    %1201 = vmatprep.subr.mxu0 0.0
    %1202 = vmatpush1.msra.mxu0 0.0
    %1203 = vmatprep.subr.mxu0 0.0
    %1204 = vmatpush1.msra.mxu0 0.0
    %1205 = vmatprep.subr.mxu0 0.0
    %1206 = vmatpush1.msra.mxu0 0.0
    %1207 = vmatprep.subr.mxu0 0.0
    %1208 = vmatpush1.msra.mxu0 0.0
    %1209 = vmatprep.subr.mxu0 0.0
    %1210 = vmatpush1.msra.mxu0 0.0
    %1211 = vmatprep.subr.mxu0 0.0
    %1212 = vmatpush1.msra.mxu0 0.0
    %1213 = vmatprep.subr.mxu0 0.0
    %1214 = vmatpush1.msra.mxu0 0.0
    %1215 = vmatprep.subr.mxu0 0.0
    %1216 = vmatpush1.msra.mxu0 0.0
    %1217 = vmatprep.subr.mxu0 0.0
    %1218 = vmatpush1.msra.mxu0 0.0
    %1219 = vmatprep.subr.mxu0 0.0
    %1220 = vmatpush1.msra.mxu0 0.0
    %1221 = vmatprep.subr.mxu0 0.0
    %1222 = vmatpush1.msra.mxu0 0.0
    %1223 = vmatprep.subr.mxu0 0.0
    %1224 = vmatpush1.msra.mxu0 0.0
    %1225 = vmatprep.subr.mxu0 0.0
    %1226 = vmatpush1.msra.mxu0 0.0
    %1227 = vmatprep.subr.mxu0 0.0
    %1228 = vmatpush1.msra.mxu0 0.0
    %1229 = vmatprep.subr.mxu0 0.0
    %1230 = vmatpush1.msra.mxu0 0.0
    %1231 = vmatprep.subr.mxu0 0.0
    %1232 = vmatpush1.msra.mxu0 0.0
    %1233 = vmatprep.subr.mxu0 0.0
    %1234 = vmatpush1.msra.mxu0 0.0
    %1235 = vmatprep.subr.mxu0 0.0
    %1236 = vmatpush1.msra.mxu0 0.0
    %1237 = vmatprep.subr.mxu0 0.0
    %1238 = vmatpush1.msra.mxu0 0.0
    %1239 = vmatprep.subr.mxu0 0.0
    %1240 = vmatpush1.msra.mxu0 0.0
    %1241 = vmatprep.subr.mxu0 0.0
    %1242 = vmatpush1.msra.mxu0 0.0
    %1243 = vmatprep.subr.mxu0 0.0
    %1244 = vmatpush1.msra.mxu0 0.0
    %1245 = vmatprep.subr.mxu0 0.0
    %1246 = vmatpush1.msra.mxu0 0.0
    %1247 = vmatprep.subr.mxu0 0.0
    %1248 = vmatpush1.msra.mxu0 0.0
    %1249 = vmatprep.subr.mxu0 0.0
    %1250 = vmatpush1.msra.mxu0 0.0
    %1251 = vmatprep.subr.mxu0 0.0
    %1252 = vmatpush1.msra.mxu0 0.0
    %1253 = vmatprep.subr.mxu0 0.0
    %1254 = vmatpush1.msra.mxu0 0.0
    %1255 = vmatprep.subr.mxu0 0.0
    %1256 = vmatpush1.msra.mxu0 0.0
    %1257 = vmatprep.mubr.f32.mxu0 0.0
    %1258 = vmatmul.mubr.f32.gmra.mrb[0].mxu0 %v1113
    %v1259 = vpop.f32.mrb[0].mxu0
    %v1260 = vadd.f32 0.0, %v1259
    %v1261 = vpop.f32.mrb[0].mxu0
    %1262 = vmatprep.mubr.f32.mxu0 0.0
    %1263 = vmatmul.mubr.f32.gmra.mrb[0].mxu0 %v1116
    %v1264 = vpop.f32.mrb[0].mxu0
    %v1265 = vadd.f32 0.0, %v1264
    %v1266 = vpop.f32.mrb[0].mxu0
    %1267 = vdwg.mxu0
    %1268 = vmatprep.subr.mxu0 0.0
    %1269 = vmatpush1.msra.mxu0 %v444
    %1270 = vmatprep.subr.mxu0 0.0
    %1271 = vmatpush1.msra.mxu0 %v449
    %1272 = vmatprep.subr.mxu0 0.0
    %1273 = vmatpush1.msra.mxu0 0.0
    %1274 = vmatprep.subr.mxu0 0.0
    %1275 = vmatpush1.msra.mxu0 0.0
    %1276 = vmatprep.subr.mxu0 0.0
    %1277 = vmatpush1.msra.mxu0 0.0
    %1278 = vmatprep.subr.mxu0 0.0
    %1279 = vmatpush1.msra.mxu0 0.0
    %1280 = vmatprep.subr.mxu0 0.0
    %1281 = vmatpush1.msra.mxu0 0.0
    %1282 = vmatprep.subr.mxu0 0.0
    %1283 = vmatpush1.msra.mxu0 0.0
    %1284 = vmatprep.subr.mxu0 0.0
    %1285 = vmatpush1.msra.mxu0 0.0
    %1286 = vmatprep.subr.mxu0 0.0
    %1287 = vmatpush1.msra.mxu0 0.0
    %1288 = vmatprep.subr.mxu0 0.0
    %1289 = vmatpush1.msra.mxu0 0.0
    %1290 = vmatprep.subr.mxu0 0.0
    %1291 = vmatpush1.msra.mxu0 0.0
    %1292 = vmatprep.subr.mxu0 0.0
    %1293 = vmatpush1.msra.mxu0 0.0
    %1294 = vmatprep.subr.mxu0 0.0
    %1295 = vmatpush1.msra.mxu0 0.0
    %1296 = vmatprep.subr.mxu0 0.0
    %1297 = vmatpush1.msra.mxu0 0.0
    %1298 = vmatprep.subr.mxu0 0.0
    %1299 = vmatpush1.msra.mxu0 0.0
    %1300 = vmatprep.subr.mxu0 0.0
    %1301 = vmatpush1.msra.mxu0 0.0
    %1302 = vmatprep.subr.mxu0 0.0
    %1303 = vmatpush1.msra.mxu0 0.0
    %1304 = vmatprep.subr.mxu0 0.0
    %1305 = vmatpush1.msra.mxu0 0.0
    %1306 = vmatprep.subr.mxu0 0.0
    %1307 = vmatpush1.msra.mxu0 0.0
    %1308 = vmatprep.subr.mxu0 0.0
    %1309 = vmatpush1.msra.mxu0 0.0
    %1310 = vmatprep.subr.mxu0 0.0
    %1311 = vmatpush1.msra.mxu0 0.0
    %1312 = vmatprep.subr.mxu0 0.0
    %1313 = vmatpush1.msra.mxu0 0.0
    %1314 = vmatprep.subr.mxu0 0.0
    %1315 = vmatpush1.msra.mxu0 0.0
    %1316 = vmatprep.subr.mxu0 0.0
    %1317 = vmatpush1.msra.mxu0 0.0
    %1318 = vmatprep.subr.mxu0 0.0
    %1319 = vmatpush1.msra.mxu0 0.0
    %1320 = vmatprep.subr.mxu0 0.0
    %1321 = vmatpush1.msra.mxu0 0.0
    %1322 = vmatprep.subr.mxu0 0.0
    %1323 = vmatpush1.msra.mxu0 0.0
    %1324 = vmatprep.subr.mxu0 0.0
    %1325 = vmatpush1.msra.mxu0 0.0
    %1326 = vmatprep.subr.mxu0 0.0
    %1327 = vmatpush1.msra.mxu0 0.0
    %1328 = vmatprep.subr.mxu0 0.0
    %1329 = vmatpush1.msra.mxu0 0.0
    %1330 = vmatprep.subr.mxu0 0.0
    %1331 = vmatpush1.msra.mxu0 0.0
    %1332 = vmatprep.mubr.f32.mxu0 0.0
    %1333 = vmatmul.mubr.f32.gmra.mrb[0].mxu0 %v1113
    %v1334 = vpop.f32.mrb[0].mxu0
    %v1335 = vadd.f32 0.0, %v1334
    %v1336 = vpop.f32.mrb[0].mxu0
    %1337 = vmatprep.mubr.f32.mxu0 0.0
    %1338 = vmatmul.mubr.f32.gmra.mrb[0].mxu0 %v1116
    %v1339 = vpop.f32.mrb[0].mxu0
    %v1340 = vadd.f32 0.0, %v1339
    %v1341 = vpop.f32.mrb[0].mxu0
    %1342 = vdwg.mxu0
    %1343 = vmatprep.subr.mxu0 0.0
    %1344 = vmatpush1.msra.mxu0 %v454
    %1345 = vmatprep.subr.mxu0 0.0
    %1346 = vmatpush1.msra.mxu0 %v459
    %1347 = vmatprep.subr.mxu0 0.0
    %1348 = vmatpush1.msra.mxu0 0.0
    %1349 = vmatprep.subr.mxu0 0.0
    %1350 = vmatpush1.msra.mxu0 0.0
    %1351 = vmatprep.subr.mxu0 0.0
    %1352 = vmatpush1.msra.mxu0 0.0
    %1353 = vmatprep.subr.mxu0 0.0
    %1354 = vmatpush1.msra.mxu0 0.0
    %1355 = vmatprep.subr.mxu0 0.0
    %1356 = vmatpush1.msra.mxu0 0.0
    %1357 = vmatprep.subr.mxu0 0.0
    %1358 = vmatpush1.msra.mxu0 0.0
    %1359 = vmatprep.subr.mxu0 0.0
    %1360 = vmatpush1.msra.mxu0 0.0
    %1361 = vmatprep.subr.mxu0 0.0
    %1362 = vmatpush1.msra.mxu0 0.0
    %1363 = vmatprep.subr.mxu0 0.0
    %1364 = vmatpush1.msra.mxu0 0.0
    %1365 = vmatprep.subr.mxu0 0.0
    %1366 = vmatpush1.msra.mxu0 0.0
    %1367 = vmatprep.subr.mxu0 0.0
    %1368 = vmatpush1.msra.mxu0 0.0
    %1369 = vmatprep.subr.mxu0 0.0
    %1370 = vmatpush1.msra.mxu0 0.0
    %1371 = vmatprep.subr.mxu0 0.0
    %1372 = vmatpush1.msra.mxu0 0.0
    %1373 = vmatprep.subr.mxu0 0.0
    %1374 = vmatpush1.msra.mxu0 0.0
    %1375 = vmatprep.subr.mxu0 0.0
    %1376 = vmatpush1.msra.mxu0 0.0
    %1377 = vmatprep.subr.mxu0 0.0
    %1378 = vmatpush1.msra.mxu0 0.0
    %1379 = vmatprep.subr.mxu0 0.0
    %1380 = vmatpush1.msra.mxu0 0.0
    %1381 = vmatprep.subr.mxu0 0.0
    %1382 = vmatpush1.msra.mxu0 0.0
    %1383 = vmatprep.subr.mxu0 0.0
    %1384 = vmatpush1.msra.mxu0 0.0
    %1385 = vmatprep.subr.mxu0 0.0
    %1386 = vmatpush1.msra.mxu0 0.0
    %1387 = vmatprep.subr.mxu0 0.0
    %1388 = vmatpush1.msra.mxu0 0.0
    %1389 = vmatprep.subr.mxu0 0.0
    %1390 = vmatpush1.msra.mxu0 0.0
    %1391 = vmatprep.subr.mxu0 0.0
    %1392 = vmatpush1.msra.mxu0 0.0
    %1393 = vmatprep.subr.mxu0 0.0
    %1394 = vmatpush1.msra.mxu0 0.0
    %1395 = vmatprep.subr.mxu0 0.0
    %1396 = vmatpush1.msra.mxu0 0.0
    %1397 = vmatprep.subr.mxu0 0.0
    %1398 = vmatpush1.msra.mxu0 0.0
    %1399 = vmatprep.subr.mxu0 0.0
    %1400 = vmatpush1.msra.mxu0 0.0
    %1401 = vmatprep.subr.mxu0 0.0
    %1402 = vmatpush1.msra.mxu0 0.0
    %1403 = vmatprep.subr.mxu0 0.0
    %1404 = vmatpush1.msra.mxu0 0.0
    %1405 = vmatprep.subr.mxu0 0.0
    %1406 = vmatpush1.msra.mxu0 0.0
    %1407 = vmatprep.mubr.f32.mxu0 0.0
    %1408 = vmatmul.mubr.f32.gmra.mrb[0].mxu0 %v1113
    %v1409 = vpop.f32.mrb[0].mxu0
    %v1410 = vadd.f32 0.0, %v1409
    %v1411 = vpop.f32.mrb[0].mxu0
    %1412 = vmatprep.mubr.f32.mxu0 0.0
    %1413 = vmatmul.mubr.f32.gmra.mrb[0].mxu0 %v1116
    %v1414 = vpop.f32.mrb[0].mxu0
    %v1415 = vadd.f32 0.0, %v1414
    %v1416 = vpop.f32.mrb[0].mxu0
    %1417 = vdwg.mxu0
    %1418 = vmatprep.subr.mxu0 0.0
    %1419 = vmatpush1.msra.mxu0 %v464
    %1420 = vmatprep.subr.mxu0 0.0
    %1421 = vmatpush1.msra.mxu0 %v469
    %1422 = vmatprep.subr.mxu0 0.0
    %1423 = vmatpush1.msra.mxu0 0.0
    %1424 = vmatprep.subr.mxu0 0.0
    %1425 = vmatpush1.msra.mxu0 0.0
    %1426 = vmatprep.subr.mxu0 0.0
    %1427 = vmatpush1.msra.mxu0 0.0
    %1428 = vmatprep.subr.mxu0 0.0
    %1429 = vmatpush1.msra.mxu0 0.0
    %1430 = vmatprep.subr.mxu0 0.0
    %1431 = vmatpush1.msra.mxu0 0.0
    %1432 = vmatprep.subr.mxu0 0.0
    %1433 = vmatpush1.msra.mxu0 0.0
    %1434 = vmatprep.subr.mxu0 0.0
    %1435 = vmatpush1.msra.mxu0 0.0
    %1436 = vmatprep.subr.mxu0 0.0
    %1437 = vmatpush1.msra.mxu0 0.0
    %1438 = vmatprep.subr.mxu0 0.0
    %1439 = vmatpush1.msra.mxu0 0.0
    %1440 = vmatprep.subr.mxu0 0.0
    %1441 = vmatpush1.msra.mxu0 0.0
    %1442 = vmatprep.subr.mxu0 0.0
    %1443 = vmatpush1.msra.mxu0 0.0
    %1444 = vmatprep.subr.mxu0 0.0
    %1445 = vmatpush1.msra.mxu0 0.0
    %1446 = vmatprep.subr.mxu0 0.0
    %1447 = vmatpush1.msra.mxu0 0.0
    %1448 = vmatprep.subr.mxu0 0.0
    %1449 = vmatpush1.msra.mxu0 0.0
    %1450 = vmatprep.subr.mxu0 0.0
    %1451 = vmatpush1.msra.mxu0 0.0
    %1452 = vmatprep.subr.mxu0 0.0
    %1453 = vmatpush1.msra.mxu0 0.0
    %1454 = vmatprep.subr.mxu0 0.0
    %1455 = vmatpush1.msra.mxu0 0.0
    %1456 = vmatprep.subr.mxu0 0.0
    %1457 = vmatpush1.msra.mxu0 0.0
    %1458 = vmatprep.subr.mxu0 0.0
    %1459 = vmatpush1.msra.mxu0 0.0
    %1460 = vmatprep.subr.mxu0 0.0
    %1461 = vmatpush1.msra.mxu0 0.0
    %1462 = vmatprep.subr.mxu0 0.0
    %1463 = vmatpush1.msra.mxu0 0.0
    %1464 = vmatprep.subr.mxu0 0.0
    %1465 = vmatpush1.msra.mxu0 0.0
    %1466 = vmatprep.subr.mxu0 0.0
    %1467 = vmatpush1.msra.mxu0 0.0
    %1468 = vmatprep.subr.mxu0 0.0
    %1469 = vmatpush1.msra.mxu0 0.0
    %1470 = vmatprep.subr.mxu0 0.0
    %1471 = vmatpush1.msra.mxu0 0.0
    %1472 = vmatprep.subr.mxu0 0.0
    %1473 = vmatpush1.msra.mxu0 0.0
    %1474 = vmatprep.subr.mxu0 0.0
    %1475 = vmatpush1.msra.mxu0 0.0
    %1476 = vmatprep.subr.mxu0 0.0
    %1477 = vmatpush1.msra.mxu0 0.0
    %1478 = vmatprep.subr.mxu0 0.0
    %1479 = vmatpush1.msra.mxu0 0.0
    %1480 = vmatprep.subr.mxu0 0.0
    %1481 = vmatpush1.msra.mxu0 0.0
    %1482 = vmatprep.mubr.f32.mxu0 0.0
    %1483 = vmatmul.mubr.f32.gmra.mrb[0].mxu0 %v1113
    %v1484 = vpop.f32.mrb[0].mxu0
    %v1485 = vadd.f32 0.0, %v1484
    %v1486 = vpop.f32.mrb[0].mxu0
    %1487 = vmatprep.mubr.f32.mxu0 0.0
    %1488 = vmatmul.mubr.f32.gmra.mrb[0].mxu0 %v1116
    %v1489 = vpop.f32.mrb[0].mxu0
    %v1490 = vadd.f32 0.0, %v1489
    %v1491 = vpop.f32.mrb[0].mxu0
    %1492 = vdwg.mxu0
    %1493 = vmatprep.subr.mxu0 0.0
    %1494 = vmatpush1.msra.mxu0 %v474
    %1495 = vmatprep.subr.mxu0 0.0
    %1496 = vmatpush1.msra.mxu0 %v479
    %1497 = vmatprep.subr.mxu0 0.0
    %1498 = vmatpush1.msra.mxu0 0.0
    %1499 = vmatprep.subr.mxu0 0.0
    %1500 = vmatpush1.msra.mxu0 0.0
    %1501 = vmatprep.subr.mxu0 0.0
    %1502 = vmatpush1.msra.mxu0 0.0
    %1503 = vmatprep.subr.mxu0 0.0
    %1504 = vmatpush1.msra.mxu0 0.0
    %1505 = vmatprep.subr.mxu0 0.0
    %1506 = vmatpush1.msra.mxu0 0.0
    %1507 = vmatprep.subr.mxu0 0.0
    %1508 = vmatpush1.msra.mxu0 0.0
    %1509 = vmatprep.subr.mxu0 0.0
    %1510 = vmatpush1.msra.mxu0 0.0
    %1511 = vmatprep.subr.mxu0 0.0
    %1512 = vmatpush1.msra.mxu0 0.0
    %1513 = vmatprep.subr.mxu0 0.0
    %1514 = vmatpush1.msra.mxu0 0.0
    %1515 = vmatprep.subr.mxu0 0.0
    %1516 = vmatpush1.msra.mxu0 0.0
    %1517 = vmatprep.subr.mxu0 0.0
    %1518 = vmatpush1.msra.mxu0 0.0
    %1519 = vmatprep.subr.mxu0 0.0
    %1520 = vmatpush1.msra.mxu0 0.0
    %1521 = vmatprep.subr.mxu0 0.0
    %1522 = vmatpush1.msra.mxu0 0.0
    %1523 = vmatprep.subr.mxu0 0.0
    %1524 = vmatpush1.msra.mxu0 0.0
    %1525 = vmatprep.subr.mxu0 0.0
    %1526 = vmatpush1.msra.mxu0 0.0
    %1527 = vmatprep.subr.mxu0 0.0
    %1528 = vmatpush1.msra.mxu0 0.0
    %1529 = vmatprep.subr.mxu0 0.0
    %1530 = vmatpush1.msra.mxu0 0.0
    %1531 = vmatprep.subr.mxu0 0.0
    %1532 = vmatpush1.msra.mxu0 0.0
    %1533 = vmatprep.subr.mxu0 0.0
    %1534 = vmatpush1.msra.mxu0 0.0
    %1535 = vmatprep.subr.mxu0 0.0
    %1536 = vmatpush1.msra.mxu0 0.0
    %1537 = vmatprep.subr.mxu0 0.0
    %1538 = vmatpush1.msra.mxu0 0.0
    %1539 = vmatprep.subr.mxu0 0.0
    %1540 = vmatpush1.msra.mxu0 0.0
    %1541 = vmatprep.subr.mxu0 0.0
    %1542 = vmatpush1.msra.mxu0 0.0
    %1543 = vmatprep.subr.mxu0 0.0
    %1544 = vmatpush1.msra.mxu0 0.0
    %1545 = vmatprep.subr.mxu0 0.0
    %1546 = vmatpush1.msra.mxu0 0.0
    %1547 = vmatprep.subr.mxu0 0.0
    %1548 = vmatpush1.msra.mxu0 0.0
    %1549 = vmatprep.subr.mxu0 0.0
    %1550 = vmatpush1.msra.mxu0 0.0
    %1551 = vmatprep.subr.mxu0 0.0
    %1552 = vmatpush1.msra.mxu0 0.0
    %1553 = vmatprep.subr.mxu0 0.0
    %1554 = vmatpush1.msra.mxu0 0.0
    %1555 = vmatprep.subr.mxu0 0.0
    %1556 = vmatpush1.msra.mxu0 0.0
    %1557 = vmatprep.mubr.f32.mxu0 0.0
    %1558 = vmatmul.mubr.f32.gmra.mrb[0].mxu0 %v1113
    %v1559 = vpop.f32.mrb[0].mxu0
    %v1560 = vadd.f32 0.0, %v1559
    %v1561 = vpop.f32.mrb[0].mxu0
    %1562 = vmatprep.mubr.f32.mxu0 0.0
    %1563 = vmatmul.mubr.f32.gmra.mrb[0].mxu0 %v1116
    %v1564 = vpop.f32.mrb[0].mxu0
    %v1565 = vadd.f32 0.0, %v1564
    %v1566 = vpop.f32.mrb[0].mxu0
    %1567 = vdwg.mxu0
    %1568 = vmatprep.subr.mxu0 0.0
    %1569 = vmatpush1.msra.mxu0 %v484
    %1570 = vmatprep.subr.mxu0 0.0
    %1571 = vmatpush1.msra.mxu0 %v489
    %1572 = vmatprep.subr.mxu0 0.0
    %1573 = vmatpush1.msra.mxu0 0.0
    %1574 = vmatprep.subr.mxu0 0.0
    %1575 = vmatpush1.msra.mxu0 0.0
    %1576 = vmatprep.subr.mxu0 0.0
    %1577 = vmatpush1.msra.mxu0 0.0
    %1578 = vmatprep.subr.mxu0 0.0
    %1579 = vmatpush1.msra.mxu0 0.0
    %1580 = vmatprep.subr.mxu0 0.0
    %1581 = vmatpush1.msra.mxu0 0.0
    %1582 = vmatprep.subr.mxu0 0.0
    %1583 = vmatpush1.msra.mxu0 0.0
    %1584 = vmatprep.subr.mxu0 0.0
    %1585 = vmatpush1.msra.mxu0 0.0
    %1586 = vmatprep.subr.mxu0 0.0
    %1587 = vmatpush1.msra.mxu0 0.0
    %1588 = vmatprep.subr.mxu0 0.0
    %1589 = vmatpush1.msra.mxu0 0.0
    %1590 = vmatprep.subr.mxu0 0.0
    %1591 = vmatpush1.msra.mxu0 0.0
    %1592 = vmatprep.subr.mxu0 0.0
    %1593 = vmatpush1.msra.mxu0 0.0
    %1594 = vmatprep.subr.mxu0 0.0
    %1595 = vmatpush1.msra.mxu0 0.0
    %1596 = vmatprep.subr.mxu0 0.0
    %1597 = vmatpush1.msra.mxu0 0.0
    %1598 = vmatprep.subr.mxu0 0.0
    %1599 = vmatpush1.msra.mxu0 0.0
    %1600 = vmatprep.subr.mxu0 0.0
    %1601 = vmatpush1.msra.mxu0 0.0
    %1602 = vmatprep.subr.mxu0 0.0
    %1603 = vmatpush1.msra.mxu0 0.0
    %1604 = vmatprep.subr.mxu0 0.0
    %1605 = vmatpush1.msra.mxu0 0.0
    %1606 = vmatprep.subr.mxu0 0.0
    %1607 = vmatpush1.msra.mxu0 0.0
    %1608 = vmatprep.subr.mxu0 0.0
    %1609 = vmatpush1.msra.mxu0 0.0
    %1610 = vmatprep.subr.mxu0 0.0
    %1611 = vmatpush1.msra.mxu0 0.0
    %1612 = vmatprep.subr.mxu0 0.0
    %1613 = vmatpush1.msra.mxu0 0.0
    %1614 = vmatprep.subr.mxu0 0.0
    %1615 = vmatpush1.msra.mxu0 0.0
    %1616 = vmatprep.subr.mxu0 0.0
    %1617 = vmatpush1.msra.mxu0 0.0
    %1618 = vmatprep.subr.mxu0 0.0
    %1619 = vmatpush1.msra.mxu0 0.0
    %1620 = vmatprep.subr.mxu0 0.0
    %1621 = vmatpush1.msra.mxu0 0.0
    %1622 = vmatprep.subr.mxu0 0.0
    %1623 = vmatpush1.msra.mxu0 0.0
    %1624 = vmatprep.subr.mxu0 0.0
    %1625 = vmatpush1.msra.mxu0 0.0
    %1626 = vmatprep.subr.mxu0 0.0
    %1627 = vmatpush1.msra.mxu0 0.0
    %1628 = vmatprep.subr.mxu0 0.0
    %1629 = vmatpush1.msra.mxu0 0.0
    %1630 = vmatprep.subr.mxu0 0.0
    %1631 = vmatpush1.msra.mxu0 0.0
    %1632 = vmatprep.mubr.f32.mxu0 0.0
    %1633 = vmatmul.mubr.f32.gmra.mrb[0].mxu0 %v1113
    %v1634 = vpop.f32.mrb[0].mxu0
    %v1635 = vadd.f32 0.0, %v1634
    %v1636 = vpop.f32.mrb[0].mxu0
    %1637 = vmatprep.mubr.f32.mxu0 0.0
    %1638 = vmatmul.mubr.f32.gmra.mrb[0].mxu0 %v1116
    %v1639 = vpop.f32.mrb[0].mxu0
    %v1640 = vadd.f32 0.0, %v1639
    %v1641 = vpop.f32.mrb[0].mxu0
    %1642 = vdwg.mxu0
    %1643 = vmatprep.subr.mxu0 0.0
    %1644 = vmatpush1.msra.mxu0 %v494
    %1645 = vmatprep.subr.mxu0 0.0
    %1646 = vmatpush1.msra.mxu0 %v499
    %1647 = vmatprep.subr.mxu0 0.0
    %1648 = vmatpush1.msra.mxu0 0.0
    %1649 = vmatprep.subr.mxu0 0.0
    %1650 = vmatpush1.msra.mxu0 0.0
    %1651 = vmatprep.subr.mxu0 0.0
    %1652 = vmatpush1.msra.mxu0 0.0
    %1653 = vmatprep.subr.mxu0 0.0
    %1654 = vmatpush1.msra.mxu0 0.0
    %1655 = vmatprep.subr.mxu0 0.0
    %1656 = vmatpush1.msra.mxu0 0.0
    %1657 = vmatprep.subr.mxu0 0.0
    %1658 = vmatpush1.msra.mxu0 0.0
    %1659 = vmatprep.subr.mxu0 0.0
    %1660 = vmatpush1.msra.mxu0 0.0
    %1661 = vmatprep.subr.mxu0 0.0
    %1662 = vmatpush1.msra.mxu0 0.0
    %1663 = vmatprep.subr.mxu0 0.0
    %1664 = vmatpush1.msra.mxu0 0.0
    %1665 = vmatprep.subr.mxu0 0.0
    %1666 = vmatpush1.msra.mxu0 0.0
    %1667 = vmatprep.subr.mxu0 0.0
    %1668 = vmatpush1.msra.mxu0 0.0
    %1669 = vmatprep.subr.mxu0 0.0
    %1670 = vmatpush1.msra.mxu0 0.0
    %1671 = vmatprep.subr.mxu0 0.0
    %1672 = vmatpush1.msra.mxu0 0.0
    %1673 = vmatprep.subr.mxu0 0.0
    %1674 = vmatpush1.msra.mxu0 0.0
    %1675 = vmatprep.subr.mxu0 0.0
    %1676 = vmatpush1.msra.mxu0 0.0
    %1677 = vmatprep.subr.mxu0 0.0
    %1678 = vmatpush1.msra.mxu0 0.0
    %1679 = vmatprep.subr.mxu0 0.0
    %1680 = vmatpush1.msra.mxu0 0.0
    %1681 = vmatprep.subr.mxu0 0.0
    %1682 = vmatpush1.msra.mxu0 0.0
    %1683 = vmatprep.subr.mxu0 0.0
    %1684 = vmatpush1.msra.mxu0 0.0
    %1685 = vmatprep.subr.mxu0 0.0
    %1686 = vmatpush1.msra.mxu0 0.0
    %1687 = vmatprep.subr.mxu0 0.0
    %1688 = vmatpush1.msra.mxu0 0.0
    %1689 = vmatprep.subr.mxu0 0.0
    %1690 = vmatpush1.msra.mxu0 0.0
    %1691 = vmatprep.subr.mxu0 0.0
    %1692 = vmatpush1.msra.mxu0 0.0
    %1693 = vmatprep.subr.mxu0 0.0
    %1694 = vmatpush1.msra.mxu0 0.0
    %1695 = vmatprep.subr.mxu0 0.0
    %1696 = vmatpush1.msra.mxu0 0.0
    %1697 = vmatprep.subr.mxu0 0.0
    %1698 = vmatpush1.msra.mxu0 0.0
    %1699 = vmatprep.subr.mxu0 0.0
    %1700 = vmatpush1.msra.mxu0 0.0
    %1701 = vmatprep.subr.mxu0 0.0
    %1702 = vmatpush1.msra.mxu0 0.0
    %1703 = vmatprep.subr.mxu0 0.0
    %1704 = vmatpush1.msra.mxu0 0.0
    %1705 = vmatprep.subr.mxu0 0.0
    %1706 = vmatpush1.msra.mxu0 0.0
    %1707 = vmatprep.mubr.f32.mxu0 0.0
    %1708 = vmatmul.mubr.f32.gmra.mrb[0].mxu0 %v1113
    %v1709 = vpop.f32.mrb[0].mxu0
    %v1710 = vadd.f32 0.0, %v1709
    %v1711 = vpop.f32.mrb[0].mxu0
    %1712 = vmatprep.mubr.f32.mxu0 0.0
    %1713 = vmatmul.mubr.f32.gmra.mrb[0].mxu0 %v1116
    %v1714 = vpop.f32.mrb[0].mxu0
    %v1715 = vadd.f32 0.0, %v1714
    %v1716 = vpop.f32.mrb[0].mxu0
    %1717 = vdwg.mxu0
    %v1718 = vsub.f32 %v579, %v1185
    %v1719 = vsub.f32 %v584, %v1190
    %v1720 = vsub.f32 %v654, %v1260
    %v1721 = vsub.f32 %v659, %v1265
    %v1722 = vsub.f32 %v729, %v1335
    %v1723 = vsub.f32 %v734, %v1340
    %v1724 = vsub.f32 %v804, %v1410
    %v1725 = vsub.f32 %v809, %v1415
    %v1726 = vsub.f32 %v879, %v1485
    %v1727 = vsub.f32 %v884, %v1490
    %v1728 = vsub.f32 %v954, %v1560
    %v1729 = vsub.f32 %v959, %v1565
    %v1730 = vsub.f32 %v1029, %v1635
    %v1731 = vsub.f32 %v1034, %v1640
    %v1732 = vsub.f32 %v1104, %v1710
    %v1733 = vsub.f32 %v1109, %v1715
    %1734 = vmatprep.subr.mxu0 0.0
    %1735 = vmatpush1.msra.mxu0 %v277
    %1736 = vmatprep.subr.mxu0 0.0
    %1737 = vmatpush1.msra.mxu0 %v282
    %1738 = vmatprep.subr.mxu0 0.0
    %1739 = vmatpush1.msra.mxu0 0.0
    %1740 = vmatprep.subr.mxu0 0.0
    %1741 = vmatpush1.msra.mxu0 0.0
    %1742 = vmatprep.subr.mxu0 0.0
    %1743 = vmatpush1.msra.mxu0 0.0
    %1744 = vmatprep.subr.mxu0 0.0
    %1745 = vmatpush1.msra.mxu0 0.0
    %1746 = vmatprep.subr.mxu0 0.0
    %1747 = vmatpush1.msra.mxu0 0.0
    %1748 = vmatprep.subr.mxu0 0.0
    %1749 = vmatpush1.msra.mxu0 0.0
    %1750 = vmatprep.subr.mxu0 0.0
    %1751 = vmatpush1.msra.mxu0 0.0
    %1752 = vmatprep.subr.mxu0 0.0
    %1753 = vmatpush1.msra.mxu0 0.0
    %1754 = vmatprep.subr.mxu0 0.0
    %1755 = vmatpush1.msra.mxu0 0.0
    %1756 = vmatprep.subr.mxu0 0.0
    %1757 = vmatpush1.msra.mxu0 0.0
    %1758 = vmatprep.subr.mxu0 0.0
    %1759 = vmatpush1.msra.mxu0 0.0
    %1760 = vmatprep.subr.mxu0 0.0
    %1761 = vmatpush1.msra.mxu0 0.0
    %1762 = vmatprep.subr.mxu0 0.0
    %1763 = vmatpush1.msra.mxu0 0.0
    %1764 = vmatprep.subr.mxu0 0.0
    %1765 = vmatpush1.msra.mxu0 0.0
    %1766 = vmatprep.subr.mxu0 0.0
    %1767 = vmatpush1.msra.mxu0 0.0
    %1768 = vmatprep.subr.mxu0 0.0
    %1769 = vmatpush1.msra.mxu0 0.0
    %1770 = vmatprep.subr.mxu0 0.0
    %1771 = vmatpush1.msra.mxu0 0.0
    %1772 = vmatprep.subr.mxu0 0.0
    %1773 = vmatpush1.msra.mxu0 0.0
    %1774 = vmatprep.subr.mxu0 0.0
    %1775 = vmatpush1.msra.mxu0 0.0
    %1776 = vmatprep.subr.mxu0 0.0
    %1777 = vmatpush1.msra.mxu0 0.0
    %1778 = vmatprep.subr.mxu0 0.0
    %1779 = vmatpush1.msra.mxu0 0.0
    %1780 = vmatprep.subr.mxu0 0.0
    %1781 = vmatpush1.msra.mxu0 0.0
    %1782 = vmatprep.subr.mxu0 0.0
    %1783 = vmatpush1.msra.mxu0 0.0
    %1784 = vmatprep.subr.mxu0 0.0
    %1785 = vmatpush1.msra.mxu0 0.0
    %1786 = vmatprep.subr.mxu0 0.0
    %1787 = vmatpush1.msra.mxu0 0.0
    %1788 = vmatprep.subr.mxu0 0.0
    %1789 = vmatpush1.msra.mxu0 0.0
    %1790 = vmatprep.subr.mxu0 0.0
    %1791 = vmatpush1.msra.mxu0 0.0
    %1792 = vmatprep.subr.mxu0 0.0
    %1793 = vmatpush1.msra.mxu0 0.0
    %1794 = vmatprep.subr.mxu0 0.0
    %1795 = vmatpush1.msra.mxu0 0.0
    %1796 = vmatprep.subr.mxu0 0.0
    %1797 = vmatpush1.msra.mxu0 0.0
    %1798 = vmatprep.mubr.f32.mxu0 0.0
    %1799 = vmatmul.mubr.f32.gmra.mrb[0].mxu0 %v1113
    %v1800 = vpop.f32.mrb[0].mxu0
    %v1801 = vadd.f32 0.0, %v1800
    %v1802 = vpop.f32.mrb[0].mxu0
    %1803 = vmatprep.mubr.f32.mxu0 0.0
    %1804 = vmatmul.mubr.f32.gmra.mrb[0].mxu0 %v1116
    %v1805 = vpop.f32.mrb[0].mxu0
    %v1806 = vadd.f32 0.0, %v1805
    %v1807 = vpop.f32.mrb[0].mxu0
    %1808 = vdwg.mxu0
    %1809 = vmatprep.subr.mxu0 0.0
    %1810 = vmatpush1.msra.mxu0 %v287
    %1811 = vmatprep.subr.mxu0 0.0
    %1812 = vmatpush1.msra.mxu0 %v292
    %1813 = vmatprep.subr.mxu0 0.0
    %1814 = vmatpush1.msra.mxu0 0.0
    %1815 = vmatprep.subr.mxu0 0.0
    %1816 = vmatpush1.msra.mxu0 0.0
    %1817 = vmatprep.subr.mxu0 0.0
    %1818 = vmatpush1.msra.mxu0 0.0
    %1819 = vmatprep.subr.mxu0 0.0
    %1820 = vmatpush1.msra.mxu0 0.0
    %1821 = vmatprep.subr.mxu0 0.0
    %1822 = vmatpush1.msra.mxu0 0.0
    %1823 = vmatprep.subr.mxu0 0.0
    %1824 = vmatpush1.msra.mxu0 0.0
    %1825 = vmatprep.subr.mxu0 0.0
    %1826 = vmatpush1.msra.mxu0 0.0
    %1827 = vmatprep.subr.mxu0 0.0
    %1828 = vmatpush1.msra.mxu0 0.0
    %1829 = vmatprep.subr.mxu0 0.0
    %1830 = vmatpush1.msra.mxu0 0.0
    %1831 = vmatprep.subr.mxu0 0.0
    %1832 = vmatpush1.msra.mxu0 0.0
    %1833 = vmatprep.subr.mxu0 0.0
    %1834 = vmatpush1.msra.mxu0 0.0
    %1835 = vmatprep.subr.mxu0 0.0
    %1836 = vmatpush1.msra.mxu0 0.0
    %1837 = vmatprep.subr.mxu0 0.0
    %1838 = vmatpush1.msra.mxu0 0.0
    %1839 = vmatprep.subr.mxu0 0.0
    %1840 = vmatpush1.msra.mxu0 0.0
    %1841 = vmatprep.subr.mxu0 0.0
    %1842 = vmatpush1.msra.mxu0 0.0
    %1843 = vmatprep.subr.mxu0 0.0
    %1844 = vmatpush1.msra.mxu0 0.0
    %1845 = vmatprep.subr.mxu0 0.0
    %1846 = vmatpush1.msra.mxu0 0.0
    %1847 = vmatprep.subr.mxu0 0.0
    %1848 = vmatpush1.msra.mxu0 0.0
    %1849 = vmatprep.subr.mxu0 0.0
    %1850 = vmatpush1.msra.mxu0 0.0
    %1851 = vmatprep.subr.mxu0 0.0
    %1852 = vmatpush1.msra.mxu0 0.0
    %1853 = vmatprep.subr.mxu0 0.0
    %1854 = vmatpush1.msra.mxu0 0.0
    %1855 = vmatprep.subr.mxu0 0.0
    %1856 = vmatpush1.msra.mxu0 0.0
    %1857 = vmatprep.subr.mxu0 0.0
    %1858 = vmatpush1.msra.mxu0 0.0
    %1859 = vmatprep.subr.mxu0 0.0
    %1860 = vmatpush1.msra.mxu0 0.0
    %1861 = vmatprep.subr.mxu0 0.0
    %1862 = vmatpush1.msra.mxu0 0.0
    %1863 = vmatprep.subr.mxu0 0.0
    %1864 = vmatpush1.msra.mxu0 0.0
    %1865 = vmatprep.subr.mxu0 0.0
    %1866 = vmatpush1.msra.mxu0 0.0
    %1867 = vmatprep.subr.mxu0 0.0
    %1868 = vmatpush1.msra.mxu0 0.0
    %1869 = vmatprep.subr.mxu0 0.0
    %1870 = vmatpush1.msra.mxu0 0.0
    %1871 = vmatprep.subr.mxu0 0.0
    %1872 = vmatpush1.msra.mxu0 0.0
    %1873 = vmatprep.mubr.f32.mxu0 0.0
    %1874 = vmatmul.mubr.f32.gmra.mrb[0].mxu0 %v1113
    %v1875 = vpop.f32.mrb[0].mxu0
    %v1876 = vadd.f32 0.0, %v1875
    %v1877 = vpop.f32.mrb[0].mxu0
    %1878 = vmatprep.mubr.f32.mxu0 0.0
    %1879 = vmatmul.mubr.f32.gmra.mrb[0].mxu0 %v1116
    %v1880 = vpop.f32.mrb[0].mxu0
    %v1881 = vadd.f32 0.0, %v1880
    %v1882 = vpop.f32.mrb[0].mxu0
    %1883 = vdwg.mxu0
    %1884 = vmatprep.subr.mxu0 0.0
    %1885 = vmatpush1.msra.mxu0 %v297
    %1886 = vmatprep.subr.mxu0 0.0
    %1887 = vmatpush1.msra.mxu0 %v302
    %1888 = vmatprep.subr.mxu0 0.0
    %1889 = vmatpush1.msra.mxu0 0.0
    %1890 = vmatprep.subr.mxu0 0.0
    %1891 = vmatpush1.msra.mxu0 0.0
    %1892 = vmatprep.subr.mxu0 0.0
    %1893 = vmatpush1.msra.mxu0 0.0
    %1894 = vmatprep.subr.mxu0 0.0
    %1895 = vmatpush1.msra.mxu0 0.0
    %1896 = vmatprep.subr.mxu0 0.0
    %1897 = vmatpush1.msra.mxu0 0.0
    %1898 = vmatprep.subr.mxu0 0.0
    %1899 = vmatpush1.msra.mxu0 0.0
    %1900 = vmatprep.subr.mxu0 0.0
    %1901 = vmatpush1.msra.mxu0 0.0
    %1902 = vmatprep.subr.mxu0 0.0
    %1903 = vmatpush1.msra.mxu0 0.0
    %1904 = vmatprep.subr.mxu0 0.0
    %1905 = vmatpush1.msra.mxu0 0.0
    %1906 = vmatprep.subr.mxu0 0.0
    %1907 = vmatpush1.msra.mxu0 0.0
    %1908 = vmatprep.subr.mxu0 0.0
    %1909 = vmatpush1.msra.mxu0 0.0
    %1910 = vmatprep.subr.mxu0 0.0
    %1911 = vmatpush1.msra.mxu0 0.0
    %1912 = vmatprep.subr.mxu0 0.0
    %1913 = vmatpush1.msra.mxu0 0.0
    %1914 = vmatprep.subr.mxu0 0.0
    %1915 = vmatpush1.msra.mxu0 0.0
    %1916 = vmatprep.subr.mxu0 0.0
    %1917 = vmatpush1.msra.mxu0 0.0
    %1918 = vmatprep.subr.mxu0 0.0
    %1919 = vmatpush1.msra.mxu0 0.0
    %1920 = vmatprep.subr.mxu0 0.0
    %1921 = vmatpush1.msra.mxu0 0.0
    %1922 = vmatprep.subr.mxu0 0.0
    %1923 = vmatpush1.msra.mxu0 0.0
    %1924 = vmatprep.subr.mxu0 0.0
    %1925 = vmatpush1.msra.mxu0 0.0
    %1926 = vmatprep.subr.mxu0 0.0
    %1927 = vmatpush1.msra.mxu0 0.0
    %1928 = vmatprep.subr.mxu0 0.0
    %1929 = vmatpush1.msra.mxu0 0.0
    %1930 = vmatprep.subr.mxu0 0.0
    %1931 = vmatpush1.msra.mxu0 0.0
    %1932 = vmatprep.subr.mxu0 0.0
    %1933 = vmatpush1.msra.mxu0 0.0
    %1934 = vmatprep.subr.mxu0 0.0
    %1935 = vmatpush1.msra.mxu0 0.0
    %1936 = vmatprep.subr.mxu0 0.0
    %1937 = vmatpush1.msra.mxu0 0.0
    %1938 = vmatprep.subr.mxu0 0.0
    %1939 = vmatpush1.msra.mxu0 0.0
    %1940 = vmatprep.subr.mxu0 0.0
    %1941 = vmatpush1.msra.mxu0 0.0
    %1942 = vmatprep.subr.mxu0 0.0
    %1943 = vmatpush1.msra.mxu0 0.0
    %1944 = vmatprep.subr.mxu0 0.0
    %1945 = vmatpush1.msra.mxu0 0.0
    %1946 = vmatprep.subr.mxu0 0.0
    %1947 = vmatpush1.msra.mxu0 0.0
    %1948 = vmatprep.mubr.f32.mxu0 0.0
    %1949 = vmatmul.mubr.f32.gmra.mrb[0].mxu0 %v1113
    %v1950 = vpop.f32.mrb[0].mxu0
    %v1951 = vadd.f32 0.0, %v1950
    %v1952 = vpop.f32.mrb[0].mxu0
    %1953 = vmatprep.mubr.f32.mxu0 0.0
    %1954 = vmatmul.mubr.f32.gmra.mrb[0].mxu0 %v1116
    %v1955 = vpop.f32.mrb[0].mxu0
    %v1956 = vadd.f32 0.0, %v1955
    %v1957 = vpop.f32.mrb[0].mxu0
    %1958 = vdwg.mxu0
    %1959 = vmatprep.subr.mxu0 0.0
    %1960 = vmatpush1.msra.mxu0 %v307
    %1961 = vmatprep.subr.mxu0 0.0
    %1962 = vmatpush1.msra.mxu0 %v312
    %1963 = vmatprep.subr.mxu0 0.0
    %1964 = vmatpush1.msra.mxu0 0.0
    %1965 = vmatprep.subr.mxu0 0.0
    %1966 = vmatpush1.msra.mxu0 0.0
    %1967 = vmatprep.subr.mxu0 0.0
    %1968 = vmatpush1.msra.mxu0 0.0
    %1969 = vmatprep.subr.mxu0 0.0
    %1970 = vmatpush1.msra.mxu0 0.0
    %1971 = vmatprep.subr.mxu0 0.0
    %1972 = vmatpush1.msra.mxu0 0.0
    %1973 = vmatprep.subr.mxu0 0.0
    %1974 = vmatpush1.msra.mxu0 0.0
    %1975 = vmatprep.subr.mxu0 0.0
    %1976 = vmatpush1.msra.mxu0 0.0
    %1977 = vmatprep.subr.mxu0 0.0
    %1978 = vmatpush1.msra.mxu0 0.0
    %1979 = vmatprep.subr.mxu0 0.0
    %1980 = vmatpush1.msra.mxu0 0.0
    %1981 = vmatprep.subr.mxu0 0.0
    %1982 = vmatpush1.msra.mxu0 0.0
    %1983 = vmatprep.subr.mxu0 0.0
    %1984 = vmatpush1.msra.mxu0 0.0
    %1985 = vmatprep.subr.mxu0 0.0
    %1986 = vmatpush1.msra.mxu0 0.0
    %1987 = vmatprep.subr.mxu0 0.0
    %1988 = vmatpush1.msra.mxu0 0.0
    %1989 = vmatprep.subr.mxu0 0.0
    %1990 = vmatpush1.msra.mxu0 0.0
    %1991 = vmatprep.subr.mxu0 0.0
    %1992 = vmatpush1.msra.mxu0 0.0
    %1993 = vmatprep.subr.mxu0 0.0
    %1994 = vmatpush1.msra.mxu0 0.0
    %1995 = vmatprep.subr.mxu0 0.0
    %1996 = vmatpush1.msra.mxu0 0.0
    %1997 = vmatprep.subr.mxu0 0.0
    %1998 = vmatpush1.msra.mxu0 0.0
    %1999 = vmatprep.subr.mxu0 0.0
    %2000 = vmatpush1.msra.mxu0 0.0
    %2001 = vmatprep.subr.mxu0 0.0
    %2002 = vmatpush1.msra.mxu0 0.0
    %2003 = vmatprep.subr.mxu0 0.0
    %2004 = vmatpush1.msra.mxu0 0.0
    %2005 = vmatprep.subr.mxu0 0.0
    %2006 = vmatpush1.msra.mxu0 0.0
    %2007 = vmatprep.subr.mxu0 0.0
    %2008 = vmatpush1.msra.mxu0 0.0
    %2009 = vmatprep.subr.mxu0 0.0
    %2010 = vmatpush1.msra.mxu0 0.0
    %2011 = vmatprep.subr.mxu0 0.0
    %2012 = vmatpush1.msra.mxu0 0.0
    %2013 = vmatprep.subr.mxu0 0.0
    %2014 = vmatpush1.msra.mxu0 0.0
    %2015 = vmatprep.subr.mxu0 0.0
    %2016 = vmatpush1.msra.mxu0 0.0
    %2017 = vmatprep.subr.mxu0 0.0
    %2018 = vmatpush1.msra.mxu0 0.0
    %2019 = vmatprep.subr.mxu0 0.0
    %2020 = vmatpush1.msra.mxu0 0.0
    %2021 = vmatprep.subr.mxu0 0.0
    %2022 = vmatpush1.msra.mxu0 0.0
    %2023 = vmatprep.mubr.f32.mxu0 0.0
    %2024 = vmatmul.mubr.f32.gmra.mrb[0].mxu0 %v1113
    %v2025 = vpop.f32.mrb[0].mxu0
    %v2026 = vadd.f32 0.0, %v2025
    %v2027 = vpop.f32.mrb[0].mxu0
    %2028 = vmatprep.mubr.f32.mxu0 0.0
    %2029 = vmatmul.mubr.f32.gmra.mrb[0].mxu0 %v1116
    %v2030 = vpop.f32.mrb[0].mxu0
    %v2031 = vadd.f32 0.0, %v2030
    %v2032 = vpop.f32.mrb[0].mxu0
    %2033 = vdwg.mxu0
    %2034 = vmatprep.subr.mxu0 0.0
    %2035 = vmatpush1.msra.mxu0 %v317
    %2036 = vmatprep.subr.mxu0 0.0
    %2037 = vmatpush1.msra.mxu0 %v322
    %2038 = vmatprep.subr.mxu0 0.0
    %2039 = vmatpush1.msra.mxu0 0.0
    %2040 = vmatprep.subr.mxu0 0.0
    %2041 = vmatpush1.msra.mxu0 0.0
    %2042 = vmatprep.subr.mxu0 0.0
    %2043 = vmatpush1.msra.mxu0 0.0
    %2044 = vmatprep.subr.mxu0 0.0
    %2045 = vmatpush1.msra.mxu0 0.0
    %2046 = vmatprep.subr.mxu0 0.0
    %2047 = vmatpush1.msra.mxu0 0.0
    %2048 = vmatprep.subr.mxu0 0.0
    %2049 = vmatpush1.msra.mxu0 0.0
    %2050 = vmatprep.subr.mxu0 0.0
    %2051 = vmatpush1.msra.mxu0 0.0
    %2052 = vmatprep.subr.mxu0 0.0
    %2053 = vmatpush1.msra.mxu0 0.0
    %2054 = vmatprep.subr.mxu0 0.0
    %2055 = vmatpush1.msra.mxu0 0.0
    %2056 = vmatprep.subr.mxu0 0.0
    %2057 = vmatpush1.msra.mxu0 0.0
    %2058 = vmatprep.subr.mxu0 0.0
    %2059 = vmatpush1.msra.mxu0 0.0
    %2060 = vmatprep.subr.mxu0 0.0
    %2061 = vmatpush1.msra.mxu0 0.0
    %2062 = vmatprep.subr.mxu0 0.0
    %2063 = vmatpush1.msra.mxu0 0.0
    %2064 = vmatprep.subr.mxu0 0.0
    %2065 = vmatpush1.msra.mxu0 0.0
    %2066 = vmatprep.subr.mxu0 0.0
    %2067 = vmatpush1.msra.mxu0 0.0
    %2068 = vmatprep.subr.mxu0 0.0
    %2069 = vmatpush1.msra.mxu0 0.0
    %2070 = vmatprep.subr.mxu0 0.0
    %2071 = vmatpush1.msra.mxu0 0.0
    %2072 = vmatprep.subr.mxu0 0.0
    %2073 = vmatpush1.msra.mxu0 0.0
    %2074 = vmatprep.subr.mxu0 0.0
    %2075 = vmatpush1.msra.mxu0 0.0
    %2076 = vmatprep.subr.mxu0 0.0
    %2077 = vmatpush1.msra.mxu0 0.0
    %2078 = vmatprep.subr.mxu0 0.0
    %2079 = vmatpush1.msra.mxu0 0.0
    %2080 = vmatprep.subr.mxu0 0.0
    %2081 = vmatpush1.msra.mxu0 0.0
    %2082 = vmatprep.subr.mxu0 0.0
    %2083 = vmatpush1.msra.mxu0 0.0
    %2084 = vmatprep.subr.mxu0 0.0
    %2085 = vmatpush1.msra.mxu0 0.0
    %2086 = vmatprep.subr.mxu0 0.0
    %2087 = vmatpush1.msra.mxu0 0.0
    %2088 = vmatprep.subr.mxu0 0.0
    %2089 = vmatpush1.msra.mxu0 0.0
    %2090 = vmatprep.subr.mxu0 0.0
    %2091 = vmatpush1.msra.mxu0 0.0
    %2092 = vmatprep.subr.mxu0 0.0
    %2093 = vmatpush1.msra.mxu0 0.0
    %2094 = vmatprep.subr.mxu0 0.0
    %2095 = vmatpush1.msra.mxu0 0.0
    %2096 = vmatprep.subr.mxu0 0.0
    %2097 = vmatpush1.msra.mxu0 0.0
    %2098 = vmatprep.mubr.f32.mxu0 0.0
    %2099 = vmatmul.mubr.f32.gmra.mrb[0].mxu0 %v1113
    %v2100 = vpop.f32.mrb[0].mxu0
    %v2101 = vadd.f32 0.0, %v2100
    %v2102 = vpop.f32.mrb[0].mxu0
    %2103 = vmatprep.mubr.f32.mxu0 0.0
    %2104 = vmatmul.mubr.f32.gmra.mrb[0].mxu0 %v1116
    %v2105 = vpop.f32.mrb[0].mxu0
    %v2106 = vadd.f32 0.0, %v2105
    %v2107 = vpop.f32.mrb[0].mxu0
    %2108 = vdwg.mxu0
    %2109 = vmatprep.subr.mxu0 0.0
    %2110 = vmatpush1.msra.mxu0 %v327
    %2111 = vmatprep.subr.mxu0 0.0
    %2112 = vmatpush1.msra.mxu0 %v332
    %2113 = vmatprep.subr.mxu0 0.0
    %2114 = vmatpush1.msra.mxu0 0.0
    %2115 = vmatprep.subr.mxu0 0.0
    %2116 = vmatpush1.msra.mxu0 0.0
    %2117 = vmatprep.subr.mxu0 0.0
    %2118 = vmatpush1.msra.mxu0 0.0
    %2119 = vmatprep.subr.mxu0 0.0
    %2120 = vmatpush1.msra.mxu0 0.0
    %2121 = vmatprep.subr.mxu0 0.0
    %2122 = vmatpush1.msra.mxu0 0.0
    %2123 = vmatprep.subr.mxu0 0.0
    %2124 = vmatpush1.msra.mxu0 0.0
    %2125 = vmatprep.subr.mxu0 0.0
    %2126 = vmatpush1.msra.mxu0 0.0
    %2127 = vmatprep.subr.mxu0 0.0
    %2128 = vmatpush1.msra.mxu0 0.0
    %2129 = vmatprep.subr.mxu0 0.0
    %2130 = vmatpush1.msra.mxu0 0.0
    %2131 = vmatprep.subr.mxu0 0.0
    %2132 = vmatpush1.msra.mxu0 0.0
    %2133 = vmatprep.subr.mxu0 0.0
    %2134 = vmatpush1.msra.mxu0 0.0
    %2135 = vmatprep.subr.mxu0 0.0
    %2136 = vmatpush1.msra.mxu0 0.0
    %2137 = vmatprep.subr.mxu0 0.0
    %2138 = vmatpush1.msra.mxu0 0.0
    %2139 = vmatprep.subr.mxu0 0.0
    %2140 = vmatpush1.msra.mxu0 0.0
    %2141 = vmatprep.subr.mxu0 0.0
    %2142 = vmatpush1.msra.mxu0 0.0
    %2143 = vmatprep.subr.mxu0 0.0
    %2144 = vmatpush1.msra.mxu0 0.0
    %2145 = vmatprep.subr.mxu0 0.0
    %2146 = vmatpush1.msra.mxu0 0.0
    %2147 = vmatprep.subr.mxu0 0.0
    %2148 = vmatpush1.msra.mxu0 0.0
    %2149 = vmatprep.subr.mxu0 0.0
    %2150 = vmatpush1.msra.mxu0 0.0
    %2151 = vmatprep.subr.mxu0 0.0
    %2152 = vmatpush1.msra.mxu0 0.0
    %2153 = vmatprep.subr.mxu0 0.0
    %2154 = vmatpush1.msra.mxu0 0.0
    %2155 = vmatprep.subr.mxu0 0.0
    %2156 = vmatpush1.msra.mxu0 0.0
    %2157 = vmatprep.subr.mxu0 0.0
    %2158 = vmatpush1.msra.mxu0 0.0
    %2159 = vmatprep.subr.mxu0 0.0
    %2160 = vmatpush1.msra.mxu0 0.0
    %2161 = vmatprep.subr.mxu0 0.0
    %2162 = vmatpush1.msra.mxu0 0.0
    %2163 = vmatprep.subr.mxu0 0.0
    %2164 = vmatpush1.msra.mxu0 0.0
    %2165 = vmatprep.subr.mxu0 0.0
    %2166 = vmatpush1.msra.mxu0 0.0
    %2167 = vmatprep.subr.mxu0 0.0
    %2168 = vmatpush1.msra.mxu0 0.0
    %2169 = vmatprep.subr.mxu0 0.0
    %2170 = vmatpush1.msra.mxu0 0.0
    %2171 = vmatprep.subr.mxu0 0.0
    %2172 = vmatpush1.msra.mxu0 0.0
    %2173 = vmatprep.mubr.f32.mxu0 0.0
    %2174 = vmatmul.mubr.f32.gmra.mrb[0].mxu0 %v1113
    %v2175 = vpop.f32.mrb[0].mxu0
    %v2176 = vadd.f32 0.0, %v2175
    %v2177 = vpop.f32.mrb[0].mxu0
    %2178 = vmatprep.mubr.f32.mxu0 0.0
    %2179 = vmatmul.mubr.f32.gmra.mrb[0].mxu0 %v1116
    %v2180 = vpop.f32.mrb[0].mxu0
    %v2181 = vadd.f32 0.0, %v2180
    %v2182 = vpop.f32.mrb[0].mxu0
    %2183 = vdwg.mxu0
    %2184 = vmatprep.subr.mxu0 0.0
    %2185 = vmatpush1.msra.mxu0 %v337
    %2186 = vmatprep.subr.mxu0 0.0
    %2187 = vmatpush1.msra.mxu0 %v342
    %2188 = vmatprep.subr.mxu0 0.0
    %2189 = vmatpush1.msra.mxu0 0.0
    %2190 = vmatprep.subr.mxu0 0.0
    %2191 = vmatpush1.msra.mxu0 0.0
    %2192 = vmatprep.subr.mxu0 0.0
    %2193 = vmatpush1.msra.mxu0 0.0
    %2194 = vmatprep.subr.mxu0 0.0
    %2195 = vmatpush1.msra.mxu0 0.0
    %2196 = vmatprep.subr.mxu0 0.0
    %2197 = vmatpush1.msra.mxu0 0.0
    %2198 = vmatprep.subr.mxu0 0.0
    %2199 = vmatpush1.msra.mxu0 0.0
    %2200 = vmatprep.subr.mxu0 0.0
    %2201 = vmatpush1.msra.mxu0 0.0
    %2202 = vmatprep.subr.mxu0 0.0
    %2203 = vmatpush1.msra.mxu0 0.0
    %2204 = vmatprep.subr.mxu0 0.0
    %2205 = vmatpush1.msra.mxu0 0.0
    %2206 = vmatprep.subr.mxu0 0.0
    %2207 = vmatpush1.msra.mxu0 0.0
    %2208 = vmatprep.subr.mxu0 0.0
    %2209 = vmatpush1.msra.mxu0 0.0
    %2210 = vmatprep.subr.mxu0 0.0
    %2211 = vmatpush1.msra.mxu0 0.0
    %2212 = vmatprep.subr.mxu0 0.0
    %2213 = vmatpush1.msra.mxu0 0.0
    %2214 = vmatprep.subr.mxu0 0.0
    %2215 = vmatpush1.msra.mxu0 0.0
    %2216 = vmatprep.subr.mxu0 0.0
    %2217 = vmatpush1.msra.mxu0 0.0
    %2218 = vmatprep.subr.mxu0 0.0
    %2219 = vmatpush1.msra.mxu0 0.0
    %2220 = vmatprep.subr.mxu0 0.0
    %2221 = vmatpush1.msra.mxu0 0.0
    %2222 = vmatprep.subr.mxu0 0.0
    %2223 = vmatpush1.msra.mxu0 0.0
    %2224 = vmatprep.subr.mxu0 0.0
    %2225 = vmatpush1.msra.mxu0 0.0
    %2226 = vmatprep.subr.mxu0 0.0
    %2227 = vmatpush1.msra.mxu0 0.0
    %2228 = vmatprep.subr.mxu0 0.0
    %2229 = vmatpush1.msra.mxu0 0.0
    %2230 = vmatprep.subr.mxu0 0.0
    %2231 = vmatpush1.msra.mxu0 0.0
    %2232 = vmatprep.subr.mxu0 0.0
    %2233 = vmatpush1.msra.mxu0 0.0
    %2234 = vmatprep.subr.mxu0 0.0
    %2235 = vmatpush1.msra.mxu0 0.0
    %2236 = vmatprep.subr.mxu0 0.0
    %2237 = vmatpush1.msra.mxu0 0.0
    %2238 = vmatprep.subr.mxu0 0.0
    %2239 = vmatpush1.msra.mxu0 0.0
    %2240 = vmatprep.subr.mxu0 0.0
    %2241 = vmatpush1.msra.mxu0 0.0
    %2242 = vmatprep.subr.mxu0 0.0
    %2243 = vmatpush1.msra.mxu0 0.0
    %2244 = vmatprep.subr.mxu0 0.0
    %2245 = vmatpush1.msra.mxu0 0.0
    %2246 = vmatprep.subr.mxu0 0.0
    %2247 = vmatpush1.msra.mxu0 0.0
    %2248 = vmatprep.mubr.f32.mxu0 0.0
    %2249 = vmatmul.mubr.f32.gmra.mrb[0].mxu0 %v1113
    %v2250 = vpop.f32.mrb[0].mxu0
    %v2251 = vadd.f32 0.0, %v2250
    %v2252 = vpop.f32.mrb[0].mxu0
    %2253 = vmatprep.mubr.f32.mxu0 0.0
    %2254 = vmatmul.mubr.f32.gmra.mrb[0].mxu0 %v1116
    %v2255 = vpop.f32.mrb[0].mxu0
    %v2256 = vadd.f32 0.0, %v2255
    %v2257 = vpop.f32.mrb[0].mxu0
    %2258 = vdwg.mxu0
    %2259 = vmatprep.subr.mxu0 0.0
    %2260 = vmatpush1.msra.mxu0 %v347
    %2261 = vmatprep.subr.mxu0 0.0
    %2262 = vmatpush1.msra.mxu0 %v352
    %2263 = vmatprep.subr.mxu0 0.0
    %2264 = vmatpush1.msra.mxu0 0.0
    %2265 = vmatprep.subr.mxu0 0.0
    %2266 = vmatpush1.msra.mxu0 0.0
    %2267 = vmatprep.subr.mxu0 0.0
    %2268 = vmatpush1.msra.mxu0 0.0
    %2269 = vmatprep.subr.mxu0 0.0
    %2270 = vmatpush1.msra.mxu0 0.0
    %2271 = vmatprep.subr.mxu0 0.0
    %2272 = vmatpush1.msra.mxu0 0.0
    %2273 = vmatprep.subr.mxu0 0.0
    %2274 = vmatpush1.msra.mxu0 0.0
    %2275 = vmatprep.subr.mxu0 0.0
    %2276 = vmatpush1.msra.mxu0 0.0
    %2277 = vmatprep.subr.mxu0 0.0
    %2278 = vmatpush1.msra.mxu0 0.0
    %2279 = vmatprep.subr.mxu0 0.0
    %2280 = vmatpush1.msra.mxu0 0.0
    %2281 = vmatprep.subr.mxu0 0.0
    %2282 = vmatpush1.msra.mxu0 0.0
    %2283 = vmatprep.subr.mxu0 0.0
    %2284 = vmatpush1.msra.mxu0 0.0
    %2285 = vmatprep.subr.mxu0 0.0
    %2286 = vmatpush1.msra.mxu0 0.0
    %2287 = vmatprep.subr.mxu0 0.0
    %2288 = vmatpush1.msra.mxu0 0.0
    %2289 = vmatprep.subr.mxu0 0.0
    %2290 = vmatpush1.msra.mxu0 0.0
    %2291 = vmatprep.subr.mxu0 0.0
    %2292 = vmatpush1.msra.mxu0 0.0
    %2293 = vmatprep.subr.mxu0 0.0
    %2294 = vmatpush1.msra.mxu0 0.0
    %2295 = vmatprep.subr.mxu0 0.0
    %2296 = vmatpush1.msra.mxu0 0.0
    %2297 = vmatprep.subr.mxu0 0.0
    %2298 = vmatpush1.msra.mxu0 0.0
    %2299 = vmatprep.subr.mxu0 0.0
    %2300 = vmatpush1.msra.mxu0 0.0
    %2301 = vmatprep.subr.mxu0 0.0
    %2302 = vmatpush1.msra.mxu0 0.0
    %2303 = vmatprep.subr.mxu0 0.0
    %2304 = vmatpush1.msra.mxu0 0.0
    %2305 = vmatprep.subr.mxu0 0.0
    %2306 = vmatpush1.msra.mxu0 0.0
    %2307 = vmatprep.subr.mxu0 0.0
    %2308 = vmatpush1.msra.mxu0 0.0
    %2309 = vmatprep.subr.mxu0 0.0
    %2310 = vmatpush1.msra.mxu0 0.0
    %2311 = vmatprep.subr.mxu0 0.0
    %2312 = vmatpush1.msra.mxu0 0.0
    %2313 = vmatprep.subr.mxu0 0.0
    %2314 = vmatpush1.msra.mxu0 0.0
    %2315 = vmatprep.subr.mxu0 0.0
    %2316 = vmatpush1.msra.mxu0 0.0
    %2317 = vmatprep.subr.mxu0 0.0
    %2318 = vmatpush1.msra.mxu0 0.0
    %2319 = vmatprep.subr.mxu0 0.0
    %2320 = vmatpush1.msra.mxu0 0.0
    %2321 = vmatprep.subr.mxu0 0.0
    %2322 = vmatpush1.msra.mxu0 0.0
    %2323 = vmatprep.mubr.f32.mxu0 0.0
    %2324 = vmatmul.mubr.f32.gmra.mrb[0].mxu0 %v1113
    %v2325 = vpop.f32.mrb[0].mxu0
    %v2326 = vadd.f32 0.0, %v2325
    %v2327 = vpop.f32.mrb[0].mxu0
    %2328 = vmatprep.mubr.f32.mxu0 0.0
    %2329 = vmatmul.mubr.f32.gmra.mrb[0].mxu0 %v1116
    %v2330 = vpop.f32.mrb[0].mxu0
    %v2331 = vadd.f32 0.0, %v2330
    %v2332 = vpop.f32.mrb[0].mxu0
    %2333 = vdwg.mxu0
    %2334 = vmatprep.subr.mxu0 0.0
    %2335 = vmatpush1.msra.mxu0 %v424
    %2336 = vmatprep.subr.mxu0 0.0
    %2337 = vmatpush1.msra.mxu0 %v429
    %2338 = vmatprep.subr.mxu0 0.0
    %2339 = vmatpush1.msra.mxu0 0.0
    %2340 = vmatprep.subr.mxu0 0.0
    %2341 = vmatpush1.msra.mxu0 0.0
    %2342 = vmatprep.subr.mxu0 0.0
    %2343 = vmatpush1.msra.mxu0 0.0
    %2344 = vmatprep.subr.mxu0 0.0
    %2345 = vmatpush1.msra.mxu0 0.0
    %2346 = vmatprep.subr.mxu0 0.0
    %2347 = vmatpush1.msra.mxu0 0.0
    %2348 = vmatprep.subr.mxu0 0.0
    %2349 = vmatpush1.msra.mxu0 0.0
    %2350 = vmatprep.subr.mxu0 0.0
    %2351 = vmatpush1.msra.mxu0 0.0
    %2352 = vmatprep.subr.mxu0 0.0
    %2353 = vmatpush1.msra.mxu0 0.0
    %2354 = vmatprep.subr.mxu0 0.0
    %2355 = vmatpush1.msra.mxu0 0.0
    %2356 = vmatprep.subr.mxu0 0.0
    %2357 = vmatpush1.msra.mxu0 0.0
    %2358 = vmatprep.subr.mxu0 0.0
    %2359 = vmatpush1.msra.mxu0 0.0
    %2360 = vmatprep.subr.mxu0 0.0
    %2361 = vmatpush1.msra.mxu0 0.0
    %2362 = vmatprep.subr.mxu0 0.0
    %2363 = vmatpush1.msra.mxu0 0.0
    %2364 = vmatprep.subr.mxu0 0.0
    %2365 = vmatpush1.msra.mxu0 0.0
    %2366 = vmatprep.subr.mxu0 0.0
    %2367 = vmatpush1.msra.mxu0 0.0
    %2368 = vmatprep.subr.mxu0 0.0
    %2369 = vmatpush1.msra.mxu0 0.0
    %2370 = vmatprep.subr.mxu0 0.0
    %2371 = vmatpush1.msra.mxu0 0.0
    %2372 = vmatprep.subr.mxu0 0.0
    %2373 = vmatpush1.msra.mxu0 0.0
    %2374 = vmatprep.subr.mxu0 0.0
    %2375 = vmatpush1.msra.mxu0 0.0
    %2376 = vmatprep.subr.mxu0 0.0
    %2377 = vmatpush1.msra.mxu0 0.0
    %2378 = vmatprep.subr.mxu0 0.0
    %2379 = vmatpush1.msra.mxu0 0.0
    %2380 = vmatprep.subr.mxu0 0.0
    %2381 = vmatpush1.msra.mxu0 0.0
    %2382 = vmatprep.subr.mxu0 0.0
    %2383 = vmatpush1.msra.mxu0 0.0
    %2384 = vmatprep.subr.mxu0 0.0
    %2385 = vmatpush1.msra.mxu0 0.0
    %2386 = vmatprep.subr.mxu0 0.0
    %2387 = vmatpush1.msra.mxu0 0.0
    %2388 = vmatprep.subr.mxu0 0.0
    %2389 = vmatpush1.msra.mxu0 0.0
    %2390 = vmatprep.subr.mxu0 0.0
    %2391 = vmatpush1.msra.mxu0 0.0
    %2392 = vmatprep.subr.mxu0 0.0
    %2393 = vmatpush1.msra.mxu0 0.0
    %2394 = vmatprep.subr.mxu0 0.0
    %2395 = vmatpush1.msra.mxu0 0.0
    %2396 = vmatprep.subr.mxu0 0.0
    %2397 = vmatpush1.msra.mxu0 0.0
    %2398 = vmatprep.mubr.f32.mxu0 0.0
    %2399 = vmatmul.mubr.f32.gmra.mrb[0].mxu0 %v507
    %v2400 = vpop.f32.mrb[0].mxu0
    %v2401 = vadd.f32 %v1801, %v2400
    %v2402 = vpop.f32.mrb[0].mxu0
    %2403 = vmatprep.mubr.f32.mxu0 0.0
    %2404 = vmatmul.mubr.f32.gmra.mrb[0].mxu0 %v510
    %v2405 = vpop.f32.mrb[0].mxu0
    %v2406 = vadd.f32 %v1806, %v2405
    %v2407 = vpop.f32.mrb[0].mxu0
    %2408 = vdwg.mxu0
    %2409 = vmatprep.subr.mxu0 0.0
    %2410 = vmatpush1.msra.mxu0 %v434
    %2411 = vmatprep.subr.mxu0 0.0
    %2412 = vmatpush1.msra.mxu0 %v439
    %2413 = vmatprep.subr.mxu0 0.0
    %2414 = vmatpush1.msra.mxu0 0.0
    %2415 = vmatprep.subr.mxu0 0.0
    %2416 = vmatpush1.msra.mxu0 0.0
    %2417 = vmatprep.subr.mxu0 0.0
    %2418 = vmatpush1.msra.mxu0 0.0
    %2419 = vmatprep.subr.mxu0 0.0
    %2420 = vmatpush1.msra.mxu0 0.0
    %2421 = vmatprep.subr.mxu0 0.0
    %2422 = vmatpush1.msra.mxu0 0.0
    %2423 = vmatprep.subr.mxu0 0.0
    %2424 = vmatpush1.msra.mxu0 0.0
    %2425 = vmatprep.subr.mxu0 0.0
    %2426 = vmatpush1.msra.mxu0 0.0
    %2427 = vmatprep.subr.mxu0 0.0
    %2428 = vmatpush1.msra.mxu0 0.0
    %2429 = vmatprep.subr.mxu0 0.0
    %2430 = vmatpush1.msra.mxu0 0.0
    %2431 = vmatprep.subr.mxu0 0.0
    %2432 = vmatpush1.msra.mxu0 0.0
    %2433 = vmatprep.subr.mxu0 0.0
    %2434 = vmatpush1.msra.mxu0 0.0
    %2435 = vmatprep.subr.mxu0 0.0
    %2436 = vmatpush1.msra.mxu0 0.0
    %2437 = vmatprep.subr.mxu0 0.0
    %2438 = vmatpush1.msra.mxu0 0.0
    %2439 = vmatprep.subr.mxu0 0.0
    %2440 = vmatpush1.msra.mxu0 0.0
    %2441 = vmatprep.subr.mxu0 0.0
    %2442 = vmatpush1.msra.mxu0 0.0
    %2443 = vmatprep.subr.mxu0 0.0
    %2444 = vmatpush1.msra.mxu0 0.0
    %2445 = vmatprep.subr.mxu0 0.0
    %2446 = vmatpush1.msra.mxu0 0.0
    %2447 = vmatprep.subr.mxu0 0.0
    %2448 = vmatpush1.msra.mxu0 0.0
    %2449 = vmatprep.subr.mxu0 0.0
    %2450 = vmatpush1.msra.mxu0 0.0
    %2451 = vmatprep.subr.mxu0 0.0
    %2452 = vmatpush1.msra.mxu0 0.0
    %2453 = vmatprep.subr.mxu0 0.0
    %2454 = vmatpush1.msra.mxu0 0.0
    %2455 = vmatprep.subr.mxu0 0.0
    %2456 = vmatpush1.msra.mxu0 0.0
    %2457 = vmatprep.subr.mxu0 0.0
    %2458 = vmatpush1.msra.mxu0 0.0
    %2459 = vmatprep.subr.mxu0 0.0
    %2460 = vmatpush1.msra.mxu0 0.0
    %2461 = vmatprep.subr.mxu0 0.0
    %2462 = vmatpush1.msra.mxu0 0.0
    %2463 = vmatprep.subr.mxu0 0.0
    %2464 = vmatpush1.msra.mxu0 0.0
    %2465 = vmatprep.subr.mxu0 0.0
    %2466 = vmatpush1.msra.mxu0 0.0
    %2467 = vmatprep.subr.mxu0 0.0
    %2468 = vmatpush1.msra.mxu0 0.0
    %2469 = vmatprep.subr.mxu0 0.0
    %2470 = vmatpush1.msra.mxu0 0.0
    %2471 = vmatprep.subr.mxu0 0.0
    %2472 = vmatpush1.msra.mxu0 0.0
    %2473 = vmatprep.mubr.f32.mxu0 0.0
    %2474 = vmatmul.mubr.f32.gmra.mrb[0].mxu0 %v507
    %v2475 = vpop.f32.mrb[0].mxu0
    %v2476 = vadd.f32 %v1876, %v2475
    %v2477 = vpop.f32.mrb[0].mxu0
    %2478 = vmatprep.mubr.f32.mxu0 0.0
    %2479 = vmatmul.mubr.f32.gmra.mrb[0].mxu0 %v510
    %v2480 = vpop.f32.mrb[0].mxu0
    %v2481 = vadd.f32 %v1881, %v2480
    %v2482 = vpop.f32.mrb[0].mxu0
    %2483 = vdwg.mxu0
    %2484 = vmatprep.subr.mxu0 0.0
    %2485 = vmatpush1.msra.mxu0 %v444
    %2486 = vmatprep.subr.mxu0 0.0
    %2487 = vmatpush1.msra.mxu0 %v449
    %2488 = vmatprep.subr.mxu0 0.0
    %2489 = vmatpush1.msra.mxu0 0.0
    %2490 = vmatprep.subr.mxu0 0.0
    %2491 = vmatpush1.msra.mxu0 0.0
    %2492 = vmatprep.subr.mxu0 0.0
    %2493 = vmatpush1.msra.mxu0 0.0
    %2494 = vmatprep.subr.mxu0 0.0
    %2495 = vmatpush1.msra.mxu0 0.0
    %2496 = vmatprep.subr.mxu0 0.0
    %2497 = vmatpush1.msra.mxu0 0.0
    %2498 = vmatprep.subr.mxu0 0.0
    %2499 = vmatpush1.msra.mxu0 0.0
    %2500 = vmatprep.subr.mxu0 0.0
    %2501 = vmatpush1.msra.mxu0 0.0
    %2502 = vmatprep.subr.mxu0 0.0
    %2503 = vmatpush1.msra.mxu0 0.0
    %2504 = vmatprep.subr.mxu0 0.0
    %2505 = vmatpush1.msra.mxu0 0.0
    %2506 = vmatprep.subr.mxu0 0.0
    %2507 = vmatpush1.msra.mxu0 0.0
    %2508 = vmatprep.subr.mxu0 0.0
    %2509 = vmatpush1.msra.mxu0 0.0
    %2510 = vmatprep.subr.mxu0 0.0
    %2511 = vmatpush1.msra.mxu0 0.0
    %2512 = vmatprep.subr.mxu0 0.0
    %2513 = vmatpush1.msra.mxu0 0.0
    %2514 = vmatprep.subr.mxu0 0.0
    %2515 = vmatpush1.msra.mxu0 0.0
    %2516 = vmatprep.subr.mxu0 0.0
    %2517 = vmatpush1.msra.mxu0 0.0
    %2518 = vmatprep.subr.mxu0 0.0
    %2519 = vmatpush1.msra.mxu0 0.0
    %2520 = vmatprep.subr.mxu0 0.0
    %2521 = vmatpush1.msra.mxu0 0.0
    %2522 = vmatprep.subr.mxu0 0.0
    %2523 = vmatpush1.msra.mxu0 0.0
    %2524 = vmatprep.subr.mxu0 0.0
    %2525 = vmatpush1.msra.mxu0 0.0
    %2526 = vmatprep.subr.mxu0 0.0
    %2527 = vmatpush1.msra.mxu0 0.0
    %2528 = vmatprep.subr.mxu0 0.0
    %2529 = vmatpush1.msra.mxu0 0.0
    %2530 = vmatprep.subr.mxu0 0.0
    %2531 = vmatpush1.msra.mxu0 0.0
    %2532 = vmatprep.subr.mxu0 0.0
    %2533 = vmatpush1.msra.mxu0 0.0
    %2534 = vmatprep.subr.mxu0 0.0
    %2535 = vmatpush1.msra.mxu0 0.0
    %2536 = vmatprep.subr.mxu0 0.0
    %2537 = vmatpush1.msra.mxu0 0.0
    %2538 = vmatprep.subr.mxu0 0.0
    %2539 = vmatpush1.msra.mxu0 0.0
    %2540 = vmatprep.subr.mxu0 0.0
    %2541 = vmatpush1.msra.mxu0 0.0
    %2542 = vmatprep.subr.mxu0 0.0
    %2543 = vmatpush1.msra.mxu0 0.0
    %2544 = vmatprep.subr.mxu0 0.0
    %2545 = vmatpush1.msra.mxu0 0.0
    %2546 = vmatprep.subr.mxu0 0.0
    %2547 = vmatpush1.msra.mxu0 0.0
    %2548 = vmatprep.mubr.f32.mxu0 0.0
    %2549 = vmatmul.mubr.f32.gmra.mrb[0].mxu0 %v507
    %v2550 = vpop.f32.mrb[0].mxu0
    %v2551 = vadd.f32 %v1951, %v2550
    %v2552 = vpop.f32.mrb[0].mxu0
    %2553 = vmatprep.mubr.f32.mxu0 0.0
    %2554 = vmatmul.mubr.f32.gmra.mrb[0].mxu0 %v510
    %v2555 = vpop.f32.mrb[0].mxu0
    %v2556 = vadd.f32 %v1956, %v2555
    %v2557 = vpop.f32.mrb[0].mxu0
    %2558 = vdwg.mxu0
    %2559 = vmatprep.subr.mxu0 0.0
    %2560 = vmatpush1.msra.mxu0 %v454
    %2561 = vmatprep.subr.mxu0 0.0
    %2562 = vmatpush1.msra.mxu0 %v459
    %2563 = vmatprep.subr.mxu0 0.0
    %2564 = vmatpush1.msra.mxu0 0.0
    %2565 = vmatprep.subr.mxu0 0.0
    %2566 = vmatpush1.msra.mxu0 0.0
    %2567 = vmatprep.subr.mxu0 0.0
    %2568 = vmatpush1.msra.mxu0 0.0
    %2569 = vmatprep.subr.mxu0 0.0
    %2570 = vmatpush1.msra.mxu0 0.0
    %2571 = vmatprep.subr.mxu0 0.0
    %2572 = vmatpush1.msra.mxu0 0.0
    %2573 = vmatprep.subr.mxu0 0.0
    %2574 = vmatpush1.msra.mxu0 0.0
    %2575 = vmatprep.subr.mxu0 0.0
    %2576 = vmatpush1.msra.mxu0 0.0
    %2577 = vmatprep.subr.mxu0 0.0
    %2578 = vmatpush1.msra.mxu0 0.0
    %2579 = vmatprep.subr.mxu0 0.0
    %2580 = vmatpush1.msra.mxu0 0.0
    %2581 = vmatprep.subr.mxu0 0.0
    %2582 = vmatpush1.msra.mxu0 0.0
    %2583 = vmatprep.subr.mxu0 0.0
    %2584 = vmatpush1.msra.mxu0 0.0
    %2585 = vmatprep.subr.mxu0 0.0
    %2586 = vmatpush1.msra.mxu0 0.0
    %2587 = vmatprep.subr.mxu0 0.0
    %2588 = vmatpush1.msra.mxu0 0.0
    %2589 = vmatprep.subr.mxu0 0.0
    %2590 = vmatpush1.msra.mxu0 0.0
    %2591 = vmatprep.subr.mxu0 0.0
    %2592 = vmatpush1.msra.mxu0 0.0
    %2593 = vmatprep.subr.mxu0 0.0
    %2594 = vmatpush1.msra.mxu0 0.0
    %2595 = vmatprep.subr.mxu0 0.0
    %2596 = vmatpush1.msra.mxu0 0.0
    %2597 = vmatprep.subr.mxu0 0.0
    %2598 = vmatpush1.msra.mxu0 0.0
    %2599 = vmatprep.subr.mxu0 0.0
    %2600 = vmatpush1.msra.mxu0 0.0
    %2601 = vmatprep.subr.mxu0 0.0
    %2602 = vmatpush1.msra.mxu0 0.0
    %2603 = vmatprep.subr.mxu0 0.0
    %2604 = vmatpush1.msra.mxu0 0.0
    %2605 = vmatprep.subr.mxu0 0.0
    %2606 = vmatpush1.msra.mxu0 0.0
    %2607 = vmatprep.subr.mxu0 0.0
    %2608 = vmatpush1.msra.mxu0 0.0
    %2609 = vmatprep.subr.mxu0 0.0
    %2610 = vmatpush1.msra.mxu0 0.0
    %2611 = vmatprep.subr.mxu0 0.0
    %2612 = vmatpush1.msra.mxu0 0.0
    %2613 = vmatprep.subr.mxu0 0.0
    %2614 = vmatpush1.msra.mxu0 0.0
    %2615 = vmatprep.subr.mxu0 0.0
    %2616 = vmatpush1.msra.mxu0 0.0
    %2617 = vmatprep.subr.mxu0 0.0
    %2618 = vmatpush1.msra.mxu0 0.0
    %2619 = vmatprep.subr.mxu0 0.0
    %2620 = vmatpush1.msra.mxu0 0.0
    %2621 = vmatprep.subr.mxu0 0.0
    %2622 = vmatpush1.msra.mxu0 0.0
    %2623 = vmatprep.mubr.f32.mxu0 0.0
    %2624 = vmatmul.mubr.f32.gmra.mrb[0].mxu0 %v507
    %v2625 = vpop.f32.mrb[0].mxu0
    %v2626 = vadd.f32 %v2026, %v2625
    %v2627 = vpop.f32.mrb[0].mxu0
    %2628 = vmatprep.mubr.f32.mxu0 0.0
    %2629 = vmatmul.mubr.f32.gmra.mrb[0].mxu0 %v510
    %v2630 = vpop.f32.mrb[0].mxu0
    %v2631 = vadd.f32 %v2031, %v2630
    %v2632 = vpop.f32.mrb[0].mxu0
    %2633 = vdwg.mxu0
    %2634 = vmatprep.subr.mxu0 0.0
    %2635 = vmatpush1.msra.mxu0 %v464
    %2636 = vmatprep.subr.mxu0 0.0
    %2637 = vmatpush1.msra.mxu0 %v469
    %2638 = vmatprep.subr.mxu0 0.0
    %2639 = vmatpush1.msra.mxu0 0.0
    %2640 = vmatprep.subr.mxu0 0.0
    %2641 = vmatpush1.msra.mxu0 0.0
    %2642 = vmatprep.subr.mxu0 0.0
    %2643 = vmatpush1.msra.mxu0 0.0
    %2644 = vmatprep.subr.mxu0 0.0
    %2645 = vmatpush1.msra.mxu0 0.0
    %2646 = vmatprep.subr.mxu0 0.0
    %2647 = vmatpush1.msra.mxu0 0.0
    %2648 = vmatprep.subr.mxu0 0.0
    %2649 = vmatpush1.msra.mxu0 0.0
    %2650 = vmatprep.subr.mxu0 0.0
    %2651 = vmatpush1.msra.mxu0 0.0
    %2652 = vmatprep.subr.mxu0 0.0
    %2653 = vmatpush1.msra.mxu0 0.0
    %2654 = vmatprep.subr.mxu0 0.0
    %2655 = vmatpush1.msra.mxu0 0.0
    %2656 = vmatprep.subr.mxu0 0.0
    %2657 = vmatpush1.msra.mxu0 0.0
    %2658 = vmatprep.subr.mxu0 0.0
    %2659 = vmatpush1.msra.mxu0 0.0
    %2660 = vmatprep.subr.mxu0 0.0
    %2661 = vmatpush1.msra.mxu0 0.0
    %2662 = vmatprep.subr.mxu0 0.0
    %2663 = vmatpush1.msra.mxu0 0.0
    %2664 = vmatprep.subr.mxu0 0.0
    %2665 = vmatpush1.msra.mxu0 0.0
    %2666 = vmatprep.subr.mxu0 0.0
    %2667 = vmatpush1.msra.mxu0 0.0
    %2668 = vmatprep.subr.mxu0 0.0
    %2669 = vmatpush1.msra.mxu0 0.0
    %2670 = vmatprep.subr.mxu0 0.0
    %2671 = vmatpush1.msra.mxu0 0.0
    %2672 = vmatprep.subr.mxu0 0.0
    %2673 = vmatpush1.msra.mxu0 0.0
    %2674 = vmatprep.subr.mxu0 0.0
    %2675 = vmatpush1.msra.mxu0 0.0
    %2676 = vmatprep.subr.mxu0 0.0
    %2677 = vmatpush1.msra.mxu0 0.0
    %2678 = vmatprep.subr.mxu0 0.0
    %2679 = vmatpush1.msra.mxu0 0.0
    %2680 = vmatprep.subr.mxu0 0.0
    %2681 = vmatpush1.msra.mxu0 0.0
    %2682 = vmatprep.subr.mxu0 0.0
    %2683 = vmatpush1.msra.mxu0 0.0
    %2684 = vmatprep.subr.mxu0 0.0
    %2685 = vmatpush1.msra.mxu0 0.0
    %2686 = vmatprep.subr.mxu0 0.0
    %2687 = vmatpush1.msra.mxu0 0.0
    %2688 = vmatprep.subr.mxu0 0.0
    %2689 = vmatpush1.msra.mxu0 0.0
    %2690 = vmatprep.subr.mxu0 0.0
    %2691 = vmatpush1.msra.mxu0 0.0
    %2692 = vmatprep.subr.mxu0 0.0
    %2693 = vmatpush1.msra.mxu0 0.0
    %2694 = vmatprep.subr.mxu0 0.0
    %2695 = vmatpush1.msra.mxu0 0.0
    %2696 = vmatprep.subr.mxu0 0.0
    %2697 = vmatpush1.msra.mxu0 0.0
    %2698 = vmatprep.mubr.f32.mxu0 0.0
    %2699 = vmatmul.mubr.f32.gmra.mrb[0].mxu0 %v507
    %v2700 = vpop.f32.mrb[0].mxu0
    %v2701 = vadd.f32 %v2101, %v2700
    %v2702 = vpop.f32.mrb[0].mxu0
    %2703 = vmatprep.mubr.f32.mxu0 0.0
    %2704 = vmatmul.mubr.f32.gmra.mrb[0].mxu0 %v510
    %v2705 = vpop.f32.mrb[0].mxu0
    %v2706 = vadd.f32 %v2106, %v2705
    %v2707 = vpop.f32.mrb[0].mxu0
    %2708 = vdwg.mxu0
    %2709 = vmatprep.subr.mxu0 0.0
    %2710 = vmatpush1.msra.mxu0 %v474
    %2711 = vmatprep.subr.mxu0 0.0
    %2712 = vmatpush1.msra.mxu0 %v479
    %2713 = vmatprep.subr.mxu0 0.0
    %2714 = vmatpush1.msra.mxu0 0.0
    %2715 = vmatprep.subr.mxu0 0.0
    %2716 = vmatpush1.msra.mxu0 0.0
    %2717 = vmatprep.subr.mxu0 0.0
    %2718 = vmatpush1.msra.mxu0 0.0
    %2719 = vmatprep.subr.mxu0 0.0
    %2720 = vmatpush1.msra.mxu0 0.0
    %2721 = vmatprep.subr.mxu0 0.0
    %2722 = vmatpush1.msra.mxu0 0.0
    %2723 = vmatprep.subr.mxu0 0.0
    %2724 = vmatpush1.msra.mxu0 0.0
    %2725 = vmatprep.subr.mxu0 0.0
    %2726 = vmatpush1.msra.mxu0 0.0
    %2727 = vmatprep.subr.mxu0 0.0
    %2728 = vmatpush1.msra.mxu0 0.0
    %2729 = vmatprep.subr.mxu0 0.0
    %2730 = vmatpush1.msra.mxu0 0.0
    %2731 = vmatprep.subr.mxu0 0.0
    %2732 = vmatpush1.msra.mxu0 0.0
    %2733 = vmatprep.subr.mxu0 0.0
    %2734 = vmatpush1.msra.mxu0 0.0
    %2735 = vmatprep.subr.mxu0 0.0
    %2736 = vmatpush1.msra.mxu0 0.0
    %2737 = vmatprep.subr.mxu0 0.0
    %2738 = vmatpush1.msra.mxu0 0.0
    %2739 = vmatprep.subr.mxu0 0.0
    %2740 = vmatpush1.msra.mxu0 0.0
    %2741 = vmatprep.subr.mxu0 0.0
    %2742 = vmatpush1.msra.mxu0 0.0
    %2743 = vmatprep.subr.mxu0 0.0
    %2744 = vmatpush1.msra.mxu0 0.0
    %2745 = vmatprep.subr.mxu0 0.0
    %2746 = vmatpush1.msra.mxu0 0.0
    %2747 = vmatprep.subr.mxu0 0.0
    %2748 = vmatpush1.msra.mxu0 0.0
    %2749 = vmatprep.subr.mxu0 0.0
    %2750 = vmatpush1.msra.mxu0 0.0
    %2751 = vmatprep.subr.mxu0 0.0
    %2752 = vmatpush1.msra.mxu0 0.0
    %2753 = vmatprep.subr.mxu0 0.0
    %2754 = vmatpush1.msra.mxu0 0.0
    %2755 = vmatprep.subr.mxu0 0.0
    %2756 = vmatpush1.msra.mxu0 0.0
    %2757 = vmatprep.subr.mxu0 0.0
    %2758 = vmatpush1.msra.mxu0 0.0
    %2759 = vmatprep.subr.mxu0 0.0
    %2760 = vmatpush1.msra.mxu0 0.0
    %2761 = vmatprep.subr.mxu0 0.0
    %2762 = vmatpush1.msra.mxu0 0.0
    %2763 = vmatprep.subr.mxu0 0.0
    %2764 = vmatpush1.msra.mxu0 0.0
    %2765 = vmatprep.subr.mxu0 0.0
    %2766 = vmatpush1.msra.mxu0 0.0
    %2767 = vmatprep.subr.mxu0 0.0
    %2768 = vmatpush1.msra.mxu0 0.0
    %2769 = vmatprep.subr.mxu0 0.0
    %2770 = vmatpush1.msra.mxu0 0.0
    %2771 = vmatprep.subr.mxu0 0.0
    %2772 = vmatpush1.msra.mxu0 0.0
    %2773 = vmatprep.mubr.f32.mxu0 0.0
    %2774 = vmatmul.mubr.f32.gmra.mrb[0].mxu0 %v507
    %v2775 = vpop.f32.mrb[0].mxu0
    %v2776 = vadd.f32 %v2176, %v2775
    %v2777 = vpop.f32.mrb[0].mxu0
    %2778 = vmatprep.mubr.f32.mxu0 0.0
    %2779 = vmatmul.mubr.f32.gmra.mrb[0].mxu0 %v510
    %v2780 = vpop.f32.mrb[0].mxu0
    %v2781 = vadd.f32 %v2181, %v2780
    %v2782 = vpop.f32.mrb[0].mxu0
    %2783 = vdwg.mxu0
    %2784 = vmatprep.subr.mxu0 0.0
    %2785 = vmatpush1.msra.mxu0 %v484
    %2786 = vmatprep.subr.mxu0 0.0
    %2787 = vmatpush1.msra.mxu0 %v489
    %2788 = vmatprep.subr.mxu0 0.0
    %2789 = vmatpush1.msra.mxu0 0.0
    %2790 = vmatprep.subr.mxu0 0.0
    %2791 = vmatpush1.msra.mxu0 0.0
    %2792 = vmatprep.subr.mxu0 0.0
    %2793 = vmatpush1.msra.mxu0 0.0
    %2794 = vmatprep.subr.mxu0 0.0
    %2795 = vmatpush1.msra.mxu0 0.0
    %2796 = vmatprep.subr.mxu0 0.0
    %2797 = vmatpush1.msra.mxu0 0.0
    %2798 = vmatprep.subr.mxu0 0.0
    %2799 = vmatpush1.msra.mxu0 0.0
    %2800 = vmatprep.subr.mxu0 0.0
    %2801 = vmatpush1.msra.mxu0 0.0
    %2802 = vmatprep.subr.mxu0 0.0
    %2803 = vmatpush1.msra.mxu0 0.0
    %2804 = vmatprep.subr.mxu0 0.0
    %2805 = vmatpush1.msra.mxu0 0.0
    %2806 = vmatprep.subr.mxu0 0.0
    %2807 = vmatpush1.msra.mxu0 0.0
    %2808 = vmatprep.subr.mxu0 0.0
    %2809 = vmatpush1.msra.mxu0 0.0
    %2810 = vmatprep.subr.mxu0 0.0
    %2811 = vmatpush1.msra.mxu0 0.0
    %2812 = vmatprep.subr.mxu0 0.0
    %2813 = vmatpush1.msra.mxu0 0.0
    %2814 = vmatprep.subr.mxu0 0.0
    %2815 = vmatpush1.msra.mxu0 0.0
    %2816 = vmatprep.subr.mxu0 0.0
    %2817 = vmatpush1.msra.mxu0 0.0
    %2818 = vmatprep.subr.mxu0 0.0
    %2819 = vmatpush1.msra.mxu0 0.0
    %2820 = vmatprep.subr.mxu0 0.0
    %2821 = vmatpush1.msra.mxu0 0.0
    %2822 = vmatprep.subr.mxu0 0.0
    %2823 = vmatpush1.msra.mxu0 0.0
    %2824 = vmatprep.subr.mxu0 0.0
    %2825 = vmatpush1.msra.mxu0 0.0
    %2826 = vmatprep.subr.mxu0 0.0
    %2827 = vmatpush1.msra.mxu0 0.0
    %2828 = vmatprep.subr.mxu0 0.0
    %2829 = vmatpush1.msra.mxu0 0.0
    %2830 = vmatprep.subr.mxu0 0.0
    %2831 = vmatpush1.msra.mxu0 0.0
    %2832 = vmatprep.subr.mxu0 0.0
    %2833 = vmatpush1.msra.mxu0 0.0
    %2834 = vmatprep.subr.mxu0 0.0
    %2835 = vmatpush1.msra.mxu0 0.0
    %2836 = vmatprep.subr.mxu0 0.0
    %2837 = vmatpush1.msra.mxu0 0.0
    %2838 = vmatprep.subr.mxu0 0.0
    %2839 = vmatpush1.msra.mxu0 0.0
    %2840 = vmatprep.subr.mxu0 0.0
    %2841 = vmatpush1.msra.mxu0 0.0
    %2842 = vmatprep.subr.mxu0 0.0
    %2843 = vmatpush1.msra.mxu0 0.0
    %2844 = vmatprep.subr.mxu0 0.0
    %2845 = vmatpush1.msra.mxu0 0.0
    %2846 = vmatprep.subr.mxu0 0.0
    %2847 = vmatpush1.msra.mxu0 0.0
    %2848 = vmatprep.mubr.f32.mxu0 0.0
    %2849 = vmatmul.mubr.f32.gmra.mrb[0].mxu0 %v507
    %v2850 = vpop.f32.mrb[0].mxu0
    %v2851 = vadd.f32 %v2251, %v2850
    %v2852 = vpop.f32.mrb[0].mxu0
    %2853 = vmatprep.mubr.f32.mxu0 0.0
    %2854 = vmatmul.mubr.f32.gmra.mrb[0].mxu0 %v510
    %v2855 = vpop.f32.mrb[0].mxu0
    %v2856 = vadd.f32 %v2256, %v2855
    %v2857 = vpop.f32.mrb[0].mxu0
    %2858 = vdwg.mxu0
    %2859 = vmatprep.subr.mxu0 0.0
    %2860 = vmatpush1.msra.mxu0 %v494
    %2861 = vmatprep.subr.mxu0 0.0
    %2862 = vmatpush1.msra.mxu0 %v499
    %2863 = vmatprep.subr.mxu0 0.0
    %2864 = vmatpush1.msra.mxu0 0.0
    %2865 = vmatprep.subr.mxu0 0.0
    %2866 = vmatpush1.msra.mxu0 0.0
    %2867 = vmatprep.subr.mxu0 0.0
    %2868 = vmatpush1.msra.mxu0 0.0
    %2869 = vmatprep.subr.mxu0 0.0
    %2870 = vmatpush1.msra.mxu0 0.0
    %2871 = vmatprep.subr.mxu0 0.0
    %2872 = vmatpush1.msra.mxu0 0.0
    %2873 = vmatprep.subr.mxu0 0.0
    %2874 = vmatpush1.msra.mxu0 0.0
    %2875 = vmatprep.subr.mxu0 0.0
    %2876 = vmatpush1.msra.mxu0 0.0
    %2877 = vmatprep.subr.mxu0 0.0
    %2878 = vmatpush1.msra.mxu0 0.0
    %2879 = vmatprep.subr.mxu0 0.0
    %2880 = vmatpush1.msra.mxu0 0.0
    %2881 = vmatprep.subr.mxu0 0.0
    %2882 = vmatpush1.msra.mxu0 0.0
    %2883 = vmatprep.subr.mxu0 0.0
    %2884 = vmatpush1.msra.mxu0 0.0
    %2885 = vmatprep.subr.mxu0 0.0
    %2886 = vmatpush1.msra.mxu0 0.0
    %2887 = vmatprep.subr.mxu0 0.0
    %2888 = vmatpush1.msra.mxu0 0.0
    %2889 = vmatprep.subr.mxu0 0.0
    %2890 = vmatpush1.msra.mxu0 0.0
    %2891 = vmatprep.subr.mxu0 0.0
    %2892 = vmatpush1.msra.mxu0 0.0
    %2893 = vmatprep.subr.mxu0 0.0
    %2894 = vmatpush1.msra.mxu0 0.0
    %2895 = vmatprep.subr.mxu0 0.0
    %2896 = vmatpush1.msra.mxu0 0.0
    %2897 = vmatprep.subr.mxu0 0.0
    %2898 = vmatpush1.msra.mxu0 0.0
    %2899 = vmatprep.subr.mxu0 0.0
    %2900 = vmatpush1.msra.mxu0 0.0
    %2901 = vmatprep.subr.mxu0 0.0
    %2902 = vmatpush1.msra.mxu0 0.0
    %2903 = vmatprep.subr.mxu0 0.0
    %2904 = vmatpush1.msra.mxu0 0.0
    %2905 = vmatprep.subr.mxu0 0.0
    %2906 = vmatpush1.msra.mxu0 0.0
    %2907 = vmatprep.subr.mxu0 0.0
    %2908 = vmatpush1.msra.mxu0 0.0
    %2909 = vmatprep.subr.mxu0 0.0
    %2910 = vmatpush1.msra.mxu0 0.0
    %2911 = vmatprep.subr.mxu0 0.0
    %2912 = vmatpush1.msra.mxu0 0.0
    %2913 = vmatprep.subr.mxu0 0.0
    %2914 = vmatpush1.msra.mxu0 0.0
    %2915 = vmatprep.subr.mxu0 0.0
    %2916 = vmatpush1.msra.mxu0 0.0
    %2917 = vmatprep.subr.mxu0 0.0
    %2918 = vmatpush1.msra.mxu0 0.0
    %2919 = vmatprep.subr.mxu0 0.0
    %2920 = vmatpush1.msra.mxu0 0.0
    %2921 = vmatprep.subr.mxu0 0.0
    %2922 = vmatpush1.msra.mxu0 0.0
    %2923 = vmatprep.mubr.f32.mxu0 0.0
    %2924 = vmatmul.mubr.f32.gmra.mrb[0].mxu0 %v507
    %v2925 = vpop.f32.mrb[0].mxu0
    %v2926 = vadd.f32 %v2326, %v2925
    %v2927 = vpop.f32.mrb[0].mxu0
    %2928 = vmatprep.mubr.f32.mxu0 0.0
    %2929 = vmatmul.mubr.f32.gmra.mrb[0].mxu0 %v510
    %v2930 = vpop.f32.mrb[0].mxu0
    %v2931 = vadd.f32 %v2331, %v2930
    %v2932 = vpop.f32.mrb[0].mxu0
    %2933 = vdwg.mxu0
    %v2934 = vand.u32 2147483647, %v1718
    %v2935 = vand.u32 2147483647, %v1719
    %v2936 = vand.u32 2147483647, %v1720
    %v2937 = vand.u32 2147483647, %v1721
    %v2938 = vand.u32 2147483647, %v1722
    %v2939 = vand.u32 2147483647, %v1723
    %v2940 = vand.u32 2147483647, %v1724
    %v2941 = vand.u32 2147483647, %v1725
    %v2942 = vand.u32 2147483647, %v1726
    %v2943 = vand.u32 2147483647, %v1727
    %v2944 = vand.u32 2147483647, %v1728
    %v2945 = vand.u32 2147483647, %v1729
    %v2946 = vand.u32 2147483647, %v1730
    %v2947 = vand.u32 2147483647, %v1731
    %v2948 = vand.u32 2147483647, %v1732
    %v2949 = vand.u32 2147483647, %v1733
    %v2950 = vand.u32 2147483647, %v2401
    %v2951 = vand.u32 2147483647, %v2406
    %v2952 = vand.u32 2147483647, %v2476
    %v2953 = vand.u32 2147483647, %v2481
    %v2954 = vand.u32 2147483647, %v2551
    %v2955 = vand.u32 2147483647, %v2556
    %v2956 = vand.u32 2147483647, %v2626
    %v2957 = vand.u32 2147483647, %v2631
    %v2958 = vand.u32 2147483647, %v2701
    %v2959 = vand.u32 2147483647, %v2706
    %v2960 = vand.u32 2147483647, %v2776
    %v2961 = vand.u32 2147483647, %v2781
    %v2962 = vand.u32 2147483647, %v2851
    %v2963 = vand.u32 2147483647, %v2856
    %v2964 = vand.u32 2147483647, %v2926
    %v2965 = vand.u32 2147483647, %v2931
    %v2966 = vadd.f32 %v2934, %v2950
    %v2967 = vadd.f32 %v2935, %v2951
    %v2968 = vadd.f32 %v2936, %v2952
    %v2969 = vadd.f32 %v2937, %v2953
    %v2970 = vadd.f32 %v2938, %v2954
    %v2971 = vadd.f32 %v2939, %v2955
    %v2972 = vadd.f32 %v2940, %v2956
    %v2973 = vadd.f32 %v2941, %v2957
    %v2974 = vadd.f32 %v2942, %v2958
    %v2975 = vadd.f32 %v2943, %v2959
    %v2976 = vadd.f32 %v2944, %v2960
    %v2977 = vadd.f32 %v2945, %v2961
    %v2978 = vadd.f32 %v2946, %v2962
    %v2979 = vadd.f32 %v2947, %v2963
    %v2980 = vadd.f32 %v2948, %v2964
    %v2981 = vadd.f32 %v2949, %v2965
    %v2982 = vadd.f32 %v2966, %v2967
    %v2983 = vadd.f32 %v2982, %v2968
    %v2984 = vadd.f32 %v2983, %v2969
    %v2985 = vadd.f32 %v2984, %v2970
    %v2986 = vadd.f32 %v2985, %v2971
    %v2987 = vadd.f32 %v2986, %v2972
    %v2988 = vadd.f32 %v2987, %v2973
    %v2989 = vadd.f32 %v2988, %v2974
    %v2990 = vadd.f32 %v2989, %v2975
    %v2991 = vadd.f32 %v2990, %v2976
    %v2992 = vadd.f32 %v2991, %v2977
    %v2993 = vadd.f32 %v2992, %v2978
    %v2994 = vadd.f32 %v2993, %v2979
    %v2995 = vadd.f32 %v2994, %v2980
    %v2996 = vadd.f32 %v2995, %v2981
    %v2997 = vld [vmem:[#allocation11] sm:$0xff]
    %v2998 = vadd.f32 %v2997, %v2996
    %2999 = vst [vmem:[#allocation11] sm:$0xff] %v2998
    // Predicated region
    $region50: #{tpu_custom_call.1} parent=1 // pred_check
      _
    $region51: #{tpu_custom_call.1} parent=1 // pred_check_branch
      %3001 = sbr.rel (0) target = $region53
    $region52: #{tpu_custom_call.1} parent=1 // pred_region
      %s3003 = ssub.s32 128, 128
      %3004 = vsyncadd [#allocation4], %s3003
      %s3006 = sshll.u32 [#allocation11], 4
      %s3007 = int_to_ptr.vmem [resolvable:$true] %s3006
      %3009 = dma.vmem_to_hbm [thread:$0]  %s3007, 128, %s6, [#allocation4]
    $region53: #{tpu_custom_call.1} parent=1 // pred_fallthru
      _
    // Predicated region
    $region54: #{tpu_custom_call.1} parent=1 // pred_check
      _
    $region55: #{tpu_custom_call.1} parent=1 // pred_check_branch
      %3011 = sbr.rel (0) target = $region57
    $region56: #{tpu_custom_call.1} parent=1 // pred_region
      %3012 = dma.done [#allocation4], 128
    $region57: #{tpu_custom_call.1} parent=1 // pred_fallthru
      _
    %3013 = vsyncpa [#allocation3], 1
    %3014 = vsyncpa [#allocation6], 1
    %3015 = vsyncpa [#allocation9], 1
    %3016 = vsyncpa [#allocation4], 1

</llo_original>
